<compile_context>
chip_gen: v7x
topology: tpu7x:2x2x1
jax: 0.10.0
libtpu: 0.0.40
codegen_flags: <defaults>
</compile_context>

<pallas_src>
import numpy as np
import jax
import jax.numpy as jnp
from jax import lax
from jax.experimental import pallas as pl
from jax.experimental.pallas import tpu as pltpu


# ----------------------------------------------------------------------------
# Fused decoder kernel: two chained LSTM layers (zero initial state), executed
# as an interleaved wavefront with one combined MXU matmul per time step.
# Emits only the final hidden state of the second layer.
# ----------------------------------------------------------------------------
def fused_decoder_kernel(x_ref, w1x_ref, b1_ref, wc_ref, b2_ref, h_out_ref):
    # x_ref:    (T*B, F)              time-major, flattened input (F == 32)
    # w1x_ref:  (F, 4*H1)             W_ih^T of layer 1 (g-cols pre-scaled by 2)
    # b1_ref:   (1, 4*H1)             b_ih + b_hh of layer 1 (g-cols pre-scaled)
    # wc_ref:   (H1+H2, 4*H2 + 4*H1)  combined per-step weight:
    #              rows [0:H1]   = [ W2x (H1,4H2) | W1h (H1,4H1) ]
    #              rows [H1:]    = [ W2h (H2,4H2) | 0   (H2,4H1) ]
    # b2_ref:   (1, 4*H2)             b_ih + b_hh of layer 2 (g-cols pre-scaled)
    # h_out_ref:(B, H2)               final hidden state of layer 2
    TB, F = x_ref.shape
    B, H2 = h_out_ref.shape
    T = TB // B
    H1 = w1x_ref.shape[1] // 4
    G2 = 4 * H2

    # Hoist weight/bias loads out of the unrolled loop.
    wc = wc_ref[...]
    b2 = b2_ref[...]

    # Hoisted layer-1 input projection over all time steps at once.
    xg1 = jnp.dot(x_ref[...], w1x_ref[...],
                  preferred_element_type=jnp.float32) + b1_ref[...]

    def cell(gates, c, H):
        # gates already contains x-proj + h-proj + bias (g columns pre-scaled).
        s = jax.nn.sigmoid(gates)               # one EUP pass over the slab
        i = s[:, 0 * H:1 * H]
        f = s[:, 1 * H:2 * H]
        g = 2.0 * s[:, 2 * H:3 * H] - 1.0       # tanh via pre-scaled g columns
        o = s[:, 3 * H:4 * H]
        c_new = f * c + i * g
        h_new = o * jnp.tanh(c_new)
        return h_new, c_new

    rec1 = jnp.zeros((B, 4 * H1), jnp.float32)  # h1_{-1} @ W1h == 0
    c1 = jnp.zeros((B, H1), jnp.float32)
    h2 = jnp.zeros((B, H2), jnp.float32)
    c2 = jnp.zeros((B, H2), jnp.float32)

    for t in range(T):                          # T static & small -> full unroll
        # ---- layer-1 cell for step t (recurrent term came from step t-1) ----
        h1, c1 = cell(xg1[t * B:(t + 1) * B, :] + rec1, c1, H1)

        # ---- single MXU push: layer-2 gates for step t  AND  layer-1
        #      recurrence for step t+1 -------------------------------------
        u = jnp.concatenate([h1, h2], axis=1)   # (B, H1+H2); h2 is h2_{t-1}
        big = jnp.dot(u, wc, preferred_element_type=jnp.float32)

        # ---- layer-2 cell for step t ----
        h2, c2 = cell(big[:, :G2] + b2, c2, H2)  # slab 0: exactly one vreg wide
        rec1 = big[:, G2:]                       # slab 1: starts on vreg #1

    # Only the final hidden state is consumed downstream -> single store.
    h_out_ref[...] = h2.astype(h_out_ref.dtype)


# ----------------------------------------------------------------------------
# Parameter init (deterministic, PyTorch-style U(-1/sqrt(H), 1/sqrt(H)))
# ----------------------------------------------------------------------------
def init_lstm(key, in_size, hidden):
    bound = 1.0 / np.sqrt(hidden)
    k1, k2, k3, k4 = jax.random.split(key, 4)
    w_ih = jax.random.uniform(k1, (4 * hidden, in_size), jnp.float32, -bound, bound)
    w_hh = jax.random.uniform(k2, (4 * hidden, hidden), jnp.float32, -bound, bound)
    b_ih = jax.random.uniform(k3, (4 * hidden,), jnp.float32, -bound, bound)
    b_hh = jax.random.uniform(k4, (4 * hidden,), jnp.float32, -bound, bound)
    return w_ih.T, w_hh.T, (b_ih + b_hh)[None, :]


def init_encoder_params(key, input_size):
    ks = jax.random.split(key, 4)
    return {
        # encoder chain is dead code in forward(); params kept only for fidelity
        "enc1": init_lstm(ks[0], input_size, 8),
        "enc2": init_lstm(ks[1], 8, 32),
        "dec1": init_lstm(ks[2], 32, 8),
        "dec2": init_lstm(ks[3], 8, input_size),
    }


def _prescale_g(w_ih_t, w_hh_t, b):
    """Scale the g-gate (cell-candidate) columns by 2 so the kernel can apply a
    single sigmoid to all gates and recover tanh(x) = 2*sigmoid(2x) - 1."""
    H = w_ih_t.shape[1] // 4
    scale = jnp.concatenate([jnp.ones((2 * H,), jnp.float32),
                             2.0 * jnp.ones((H,), jnp.float32),
                             jnp.ones((H,), jnp.float32)])
    return w_ih_t * scale, w_hh_t * scale, b * scale


# ----------------------------------------------------------------------------
# Forward pass mirroring Encoder.forward (return value identical; the dead
# encoder chain is not executed)
# ----------------------------------------------------------------------------
def encoder_forward(x_btf, params):
    B, T, F = x_btf.shape
    w1x, w1h, b1 = _prescale_g(*params["dec1"])
    w2x, w2h, b2 = _prescale_g(*params["dec2"])
    H1 = w1h.shape[0]
    H2 = w2h.shape[0]

    # Combined per-step weight (assembled once, outside the kernel):
    #   [h1_t | h2_{t-1}] @ wc  ->  [ layer-2 pre-gates (4*H2) | h1_t@W1h (4*H1) ]
    wc = jnp.concatenate(
        [jnp.concatenate([w2x, w1h], axis=1),                                # (H1, 4H2+4H1)
         jnp.concatenate([w2h, jnp.zeros((H2, 4 * H1), jnp.float32)], axis=1)],  # (H2, ...)
        axis=0)

    # Time-major, flattened to (T*B, F) in the wrapper so the kernel's hoisted
    # input-projection matmul needs no in-kernel relayout.
    x_flat = jnp.transpose(x_btf, (1, 0, 2)).reshape(T * B, F)

    vmem = pl.BlockSpec(memory_space=pltpu.MemorySpace.VMEM)
    h2 = pl.pallas_call(
        fused_decoder_kernel,
        out_shape=jax.ShapeDtypeStruct((B, H2), jnp.float32),
        in_specs=[vmem] * 5,
        out_specs=vmem,
    )(x_flat, w1x, b1, wc, b2)
    return h2[None, :, :]                              # h_n: (1, B, 32)


# ----------------------------------------------------------------------------
# Pure-JAX reference (lax.scan LSTM) for a correctness check
# ----------------------------------------------------------------------------
def lstm_ref(x_tbf, w_ih_t, w_hh_t, b):
    H = w_hh_t.shape[0]
    B = x_tbf.shape[1]

    def step(carry, x_t):
        h, c = carry
        gates = x_t @ w_ih_t + h @ w_hh_t + b
        i = jax.nn.sigmoid(gates[:, :H])
        f = jax.nn.sigmoid(gates[:, H:2 * H])
        g = jnp.tanh(gates[:, 2 * H:3 * H])
        o = jax.nn.sigmoid(gates[:, 3 * H:])
        c = f * c + i * g
        h = o * jnp.tanh(c)
        return (h, c), h

    init = (jnp.zeros((B, H), jnp.float32), jnp.zeros((B, H), jnp.float32))
    _, ys = lax.scan(step, init, x_tbf)
    return ys


def encoder_forward_ref(x_btf, params):
    x_tbf = jnp.transpose(x_btf, (1, 0, 2))
    d1 = lstm_ref(x_tbf, *params["dec1"])
    d2 = lstm_ref(d1, *params["dec2"])
    return d2[-1][None, :, :]


if __name__ == "__main__":
    INPUT_SIZE = 32   # must be 32 for the decoder path to type-check (see TODO)
    B, T = 2, 8

    key = jax.random.PRNGKey(0)
    kx, kp = jax.random.split(key)
    x = jax.random.normal(kx, (B, T, INPUT_SIZE), jnp.float32)
    params = init_encoder_params(kp, INPUT_SIZE)

    hidden = jax.jit(encoder_forward)(x, params)
    hidden = jax.block_until_ready(hidden)
    assert hidden.shape == (1, B, INPUT_SIZE), hidden.shape

    hidden_ref = encoder_forward_ref(x, params)
    np.testing.assert_allclose(np.asarray(hidden), np.asarray(hidden_ref),
                               rtol=1e-4, atol=1e-4)

    print("KERNEL_OK")
</pallas_src>

<mosaic_0001>
module attributes {stable_mosaic.version = 11 : i64} {
  func.func @fused_decoder_kernel(%arg0: memref<16x32xf32, #tpu.memory_space<vmem>>, %arg1: memref<32x32xf32, #tpu.memory_space<vmem>>, %arg2: memref<1x32xf32, #tpu.memory_space<vmem>>, %arg3: memref<40x160xf32, #tpu.memory_space<vmem>>, %arg4: memref<1x128xf32, #tpu.memory_space<vmem>>, %arg5: memref<2x32xf32, #tpu.memory_space<vmem>>) attributes {dimension_semantics = [], scalar_prefetch = 0 : i64, scratch_operands = 0 : i64, tpu.core_type = #tpu.core_type<tc>} {
    %c0 = arith.constant 0 : index
    %c0_0 = arith.constant 0 : index
    %0 = vector.load %arg3[%c0, %c0_0] : memref<40x160xf32, #tpu.memory_space<vmem>>, vector<40x160xf32>
    %c0_1 = arith.constant 0 : index
    %c0_2 = arith.constant 0 : index
    %1 = vector.load %arg4[%c0_1, %c0_2] : memref<1x128xf32, #tpu.memory_space<vmem>>, vector<1x128xf32>
    %c0_3 = arith.constant 0 : index
    %c0_4 = arith.constant 0 : index
    %2 = vector.load %arg0[%c0_3, %c0_4] : memref<16x32xf32, #tpu.memory_space<vmem>>, vector<16x32xf32>
    %c0_5 = arith.constant 0 : index
    %c0_6 = arith.constant 0 : index
    %3 = vector.load %arg1[%c0_5, %c0_6] : memref<32x32xf32, #tpu.memory_space<vmem>>, vector<32x32xf32>
    %cst = arith.constant dense<0.000000e+00> : vector<16x32xf32>
    %4 = tpu.matmul %2, %3, %cst {dimension_numbers = #tpu.dot_dimension_numbers<[1], [0], [0], [1], [0, 0, 1, 1], [], []>} : vector<16x32xf32>, vector<32x32xf32>, vector<16x32xf32> -> vector<16x32xf32>
    %c0_7 = arith.constant 0 : index
    %c0_8 = arith.constant 0 : index
    %5 = vector.load %arg2[%c0_7, %c0_8] : memref<1x32xf32, #tpu.memory_space<vmem>>, vector<1x32xf32>
    %6 = vector.broadcast %5 : vector<1x32xf32> to vector<16x32xf32>
    %7 = arith.addf %4, %6 : vector<16x32xf32>
    %cst_9 = arith.constant 0.000000e+00 : f32
    %8 = vector.broadcast %cst_9 : f32 to vector<2x32xf32>
    %cst_10 = arith.constant 0.000000e+00 : f32
    %9 = vector.broadcast %cst_10 : f32 to vector<2x8xf32>
    %cst_11 = arith.constant 0.000000e+00 : f32
    %10 = vector.broadcast %cst_11 : f32 to vector<2x32xf32>
    %cst_12 = arith.constant 0.000000e+00 : f32
    %11 = vector.broadcast %cst_12 : f32 to vector<2x32xf32>
    %12 = vector.extract_strided_slice %7 {offsets = [0, 0], sizes = [2, 32], strides = [1, 1]} : vector<16x32xf32> to vector<2x32xf32>
    %13 = arith.addf %12, %8 : vector<2x32xf32>
    %14 = arith.negf %13 : vector<2x32xf32>
    %15 = math.exp %14 : vector<2x32xf32>
    %cst_13 = arith.constant 1.000000e+00 : f32
    %16 = vector.broadcast %cst_13 : f32 to vector<2x32xf32>
    %17 = arith.addf %16, %15 : vector<2x32xf32>
    %18 = arith.divf %16, %17 : vector<2x32xf32>
    %19 = vector.extract_strided_slice %18 {offsets = [0, 0], sizes = [2, 8], strides = [1, 1]} : vector<2x32xf32> to vector<2x8xf32>
    %20 = vector.extract_strided_slice %18 {offsets = [0, 8], sizes = [2, 8], strides = [1, 1]} : vector<2x32xf32> to vector<2x8xf32>
    %21 = vector.extract_strided_slice %18 {offsets = [0, 16], sizes = [2, 8], strides = [1, 1]} : vector<2x32xf32> to vector<2x8xf32>
    %cst_14 = arith.constant 2.000000e+00 : f32
    %22 = vector.broadcast %cst_14 : f32 to vector<2x8xf32>
    %23 = arith.mulf %22, %21 : vector<2x8xf32>
    %cst_15 = arith.constant 1.000000e+00 : f32
    %24 = vector.broadcast %cst_15 : f32 to vector<2x8xf32>
    %25 = arith.subf %23, %24 : vector<2x8xf32>
    %26 = vector.extract_strided_slice %18 {offsets = [0, 24], sizes = [2, 8], strides = [1, 1]} : vector<2x32xf32> to vector<2x8xf32>
    %27 = arith.mulf %20, %9 : vector<2x8xf32>
    %28 = arith.mulf %19, %25 : vector<2x8xf32>
    %29 = arith.addf %27, %28 : vector<2x8xf32>
    %30 = math.tanh %29 : vector<2x8xf32>
    %31 = arith.mulf %26, %30 : vector<2x8xf32>
    %32 = tpu.concatenate %31, %10 in 1 : vector<2x8xf32>, vector<2x32xf32> -> vector<2x40xf32>
    %cst_16 = arith.constant dense<0.000000e+00> : vector<2x160xf32>
    %33 = tpu.matmul %32, %0, %cst_16 {dimension_numbers = #tpu.dot_dimension_numbers<[1], [0], [0], [1], [0, 0, 1, 1], [], []>} : vector<2x40xf32>, vector<40x160xf32>, vector<2x160xf32> -> vector<2x160xf32>
    %34 = vector.extract_strided_slice %33 {offsets = [0, 0], sizes = [2, 128], strides = [1, 1]} : vector<2x160xf32> to vector<2x128xf32>
    %35 = vector.broadcast %1 : vector<1x128xf32> to vector<2x128xf32>
    %36 = arith.addf %34, %35 : vector<2x128xf32>
    %37 = arith.negf %36 : vector<2x128xf32>
    %38 = math.exp %37 : vector<2x128xf32>
    %cst_17 = arith.constant 1.000000e+00 : f32
    %39 = vector.broadcast %cst_17 : f32 to vector<2x128xf32>
    %40 = arith.addf %39, %38 : vector<2x128xf32>
    %41 = arith.divf %39, %40 : vector<2x128xf32>
    %42 = vector.extract_strided_slice %41 {offsets = [0, 0], sizes = [2, 32], strides = [1, 1]} : vector<2x128xf32> to vector<2x32xf32>
    %43 = vector.extract_strided_slice %41 {offsets = [0, 32], sizes = [2, 32], strides = [1, 1]} : vector<2x128xf32> to vector<2x32xf32>
    %44 = vector.extract_strided_slice %41 {offsets = [0, 64], sizes = [2, 32], strides = [1, 1]} : vector<2x128xf32> to vector<2x32xf32>
    %cst_18 = arith.constant 2.000000e+00 : f32
    %45 = vector.broadcast %cst_18 : f32 to vector<2x32xf32>
    %46 = arith.mulf %45, %44 : vector<2x32xf32>
    %cst_19 = arith.constant 1.000000e+00 : f32
    %47 = vector.broadcast %cst_19 : f32 to vector<2x32xf32>
    %48 = arith.subf %46, %47 : vector<2x32xf32>
    %49 = vector.extract_strided_slice %41 {offsets = [0, 96], sizes = [2, 32], strides = [1, 1]} : vector<2x128xf32> to vector<2x32xf32>
    %50 = arith.mulf %43, %11 : vector<2x32xf32>
    %51 = arith.mulf %42, %48 : vector<2x32xf32>
    %52 = arith.addf %50, %51 : vector<2x32xf32>
    %53 = math.tanh %52 : vector<2x32xf32>
    %54 = arith.mulf %49, %53 : vector<2x32xf32>
    %55 = vector.extract_strided_slice %33 {offsets = [0, 128], sizes = [2, 32], strides = [1, 1]} : vector<2x160xf32> to vector<2x32xf32>
    %56 = vector.extract_strided_slice %7 {offsets = [2, 0], sizes = [2, 32], strides = [1, 1]} : vector<16x32xf32> to vector<2x32xf32>
    %57 = arith.addf %56, %55 : vector<2x32xf32>
    %58 = arith.negf %57 : vector<2x32xf32>
    %59 = math.exp %58 : vector<2x32xf32>
    %cst_20 = arith.constant 1.000000e+00 : f32
    %60 = vector.broadcast %cst_20 : f32 to vector<2x32xf32>
    %61 = arith.addf %60, %59 : vector<2x32xf32>
    %62 = arith.divf %60, %61 : vector<2x32xf32>
    %63 = vector.extract_strided_slice %62 {offsets = [0, 0], sizes = [2, 8], strides = [1, 1]} : vector<2x32xf32> to vector<2x8xf32>
    %64 = vector.extract_strided_slice %62 {offsets = [0, 8], sizes = [2, 8], strides = [1, 1]} : vector<2x32xf32> to vector<2x8xf32>
    %65 = vector.extract_strided_slice %62 {offsets = [0, 16], sizes = [2, 8], strides = [1, 1]} : vector<2x32xf32> to vector<2x8xf32>
    %cst_21 = arith.constant 2.000000e+00 : f32
    %66 = vector.broadcast %cst_21 : f32 to vector<2x8xf32>
    %67 = arith.mulf %66, %65 : vector<2x8xf32>
    %cst_22 = arith.constant 1.000000e+00 : f32
    %68 = vector.broadcast %cst_22 : f32 to vector<2x8xf32>
    %69 = arith.subf %67, %68 : vector<2x8xf32>
    %70 = vector.extract_strided_slice %62 {offsets = [0, 24], sizes = [2, 8], strides = [1, 1]} : vector<2x32xf32> to vector<2x8xf32>
    %71 = arith.mulf %64, %29 : vector<2x8xf32>
    %72 = arith.mulf %63, %69 : vector<2x8xf32>
    %73 = arith.addf %71, %72 : vector<2x8xf32>
    %74 = math.tanh %73 : vector<2x8xf32>
    %75 = arith.mulf %70, %74 : vector<2x8xf32>
    %76 = tpu.concatenate %75, %54 in 1 : vector<2x8xf32>, vector<2x32xf32> -> vector<2x40xf32>
    %cst_23 = arith.constant dense<0.000000e+00> : vector<2x160xf32>
    %77 = tpu.matmul %76, %0, %cst_23 {dimension_numbers = #tpu.dot_dimension_numbers<[1], [0], [0], [1], [0, 0, 1, 1], [], []>} : vector<2x40xf32>, vector<40x160xf32>, vector<2x160xf32> -> vector<2x160xf32>
    %78 = vector.extract_strided_slice %77 {offsets = [0, 0], sizes = [2, 128], strides = [1, 1]} : vector<2x160xf32> to vector<2x128xf32>
    %79 = vector.broadcast %1 : vector<1x128xf32> to vector<2x128xf32>
    %80 = arith.addf %78, %79 : vector<2x128xf32>
    %81 = arith.negf %80 : vector<2x128xf32>
    %82 = math.exp %81 : vector<2x128xf32>
    %cst_24 = arith.constant 1.000000e+00 : f32
    %83 = vector.broadcast %cst_24 : f32 to vector<2x128xf32>
    %84 = arith.addf %83, %82 : vector<2x128xf32>
    %85 = arith.divf %83, %84 : vector<2x128xf32>
    %86 = vector.extract_strided_slice %85 {offsets = [0, 0], sizes = [2, 32], strides = [1, 1]} : vector<2x128xf32> to vector<2x32xf32>
    %87 = vector.extract_strided_slice %85 {offsets = [0, 32], sizes = [2, 32], strides = [1, 1]} : vector<2x128xf32> to vector<2x32xf32>
    %88 = vector.extract_strided_slice %85 {offsets = [0, 64], sizes = [2, 32], strides = [1, 1]} : vector<2x128xf32> to vector<2x32xf32>
    %cst_25 = arith.constant 2.000000e+00 : f32
    %89 = vector.broadcast %cst_25 : f32 to vector<2x32xf32>
    %90 = arith.mulf %89, %88 : vector<2x32xf32>
    %cst_26 = arith.constant 1.000000e+00 : f32
    %91 = vector.broadcast %cst_26 : f32 to vector<2x32xf32>
    %92 = arith.subf %90, %91 : vector<2x32xf32>
    %93 = vector.extract_strided_slice %85 {offsets = [0, 96], sizes = [2, 32], strides = [1, 1]} : vector<2x128xf32> to vector<2x32xf32>
    %94 = arith.mulf %87, %52 : vector<2x32xf32>
    %95 = arith.mulf %86, %92 : vector<2x32xf32>
    %96 = arith.addf %94, %95 : vector<2x32xf32>
    %97 = math.tanh %96 : vector<2x32xf32>
    %98 = arith.mulf %93, %97 : vector<2x32xf32>
    %99 = vector.extract_strided_slice %77 {offsets = [0, 128], sizes = [2, 32], strides = [1, 1]} : vector<2x160xf32> to vector<2x32xf32>
    %100 = vector.extract_strided_slice %7 {offsets = [4, 0], sizes = [2, 32], strides = [1, 1]} : vector<16x32xf32> to vector<2x32xf32>
    %101 = arith.addf %100, %99 : vector<2x32xf32>
    %102 = arith.negf %101 : vector<2x32xf32>
    %103 = math.exp %102 : vector<2x32xf32>
    %cst_27 = arith.constant 1.000000e+00 : f32
    %104 = vector.broadcast %cst_27 : f32 to vector<2x32xf32>
    %105 = arith.addf %104, %103 : vector<2x32xf32>
    %106 = arith.divf %104, %105 : vector<2x32xf32>
    %107 = vector.extract_strided_slice %106 {offsets = [0, 0], sizes = [2, 8], strides = [1, 1]} : vector<2x32xf32> to vector<2x8xf32>
    %108 = vector.extract_strided_slice %106 {offsets = [0, 8], sizes = [2, 8], strides = [1, 1]} : vector<2x32xf32> to vector<2x8xf32>
    %109 = vector.extract_strided_slice %106 {offsets = [0, 16], sizes = [2, 8], strides = [1, 1]} : vector<2x32xf32> to vector<2x8xf32>
    %cst_28 = arith.constant 2.000000e+00 : f32
    %110 = vector.broadcast %cst_28 : f32 to vector<2x8xf32>
    %111 = arith.mulf %110, %109 : vector<2x8xf32>
    %cst_29 = arith.constant 1.000000e+00 : f32
    %112 = vector.broadcast %cst_29 : f32 to vector<2x8xf32>
    %113 = arith.subf %111, %112 : vector<2x8xf32>
    %114 = vector.extract_strided_slice %106 {offsets = [0, 24], sizes = [2, 8], strides = [1, 1]} : vector<2x32xf32> to vector<2x8xf32>
    %115 = arith.mulf %108, %73 : vector<2x8xf32>
    %116 = arith.mulf %107, %113 : vector<2x8xf32>
    %117 = arith.addf %115, %116 : vector<2x8xf32>
    %118 = math.tanh %117 : vector<2x8xf32>
    %119 = arith.mulf %114, %118 : vector<2x8xf32>
    %120 = tpu.concatenate %119, %98 in 1 : vector<2x8xf32>, vector<2x32xf32> -> vector<2x40xf32>
    %cst_30 = arith.constant dense<0.000000e+00> : vector<2x160xf32>
    %121 = tpu.matmul %120, %0, %cst_30 {dimension_numbers = #tpu.dot_dimension_numbers<[1], [0], [0], [1], [0, 0, 1, 1], [], []>} : vector<2x40xf32>, vector<40x160xf32>, vector<2x160xf32> -> vector<2x160xf32>
    %122 = vector.extract_strided_slice %121 {offsets = [0, 0], sizes = [2, 128], strides = [1, 1]} : vector<2x160xf32> to vector<2x128xf32>
    %123 = vector.broadcast %1 : vector<1x128xf32> to vector<2x128xf32>
    %124 = arith.addf %122, %123 : vector<2x128xf32>
    %125 = arith.negf %124 : vector<2x128xf32>
    %126 = math.exp %125 : vector<2x128xf32>
    %cst_31 = arith.constant 1.000000e+00 : f32
    %127 = vector.broadcast %cst_31 : f32 to vector<2x128xf32>
    %128 = arith.addf %127, %126 : vector<2x128xf32>
    %129 = arith.divf %127, %128 : vector<2x128xf32>
    %130 = vector.extract_strided_slice %129 {offsets = [0, 0], sizes = [2, 32], strides = [1, 1]} : vector<2x128xf32> to vector<2x32xf32>
    %131 = vector.extract_strided_slice %129 {offsets = [0, 32], sizes = [2, 32], strides = [1, 1]} : vector<2x128xf32> to vector<2x32xf32>
    %132 = vector.extract_strided_slice %129 {offsets = [0, 64], sizes = [2, 32], strides = [1, 1]} : vector<2x128xf32> to vector<2x32xf32>
    %cst_32 = arith.constant 2.000000e+00 : f32
    %133 = vector.broadcast %cst_32 : f32 to vector<2x32xf32>
    %134 = arith.mulf %133, %132 : vector<2x32xf32>
    %cst_33 = arith.constant 1.000000e+00 : f32
    %135 = vector.broadcast %cst_33 : f32 to vector<2x32xf32>
    %136 = arith.subf %134, %135 : vector<2x32xf32>
    %137 = vector.extract_strided_slice %129 {offsets = [0, 96], sizes = [2, 32], strides = [1, 1]} : vector<2x128xf32> to vector<2x32xf32>
    %138 = arith.mulf %131, %96 : vector<2x32xf32>
    %139 = arith.mulf %130, %136 : vector<2x32xf32>
    %140 = arith.addf %138, %139 : vector<2x32xf32>
    %141 = math.tanh %140 : vector<2x32xf32>
    %142 = arith.mulf %137, %141 : vector<2x32xf32>
    %143 = vector.extract_strided_slice %121 {offsets = [0, 128], sizes = [2, 32], strides = [1, 1]} : vector<2x160xf32> to vector<2x32xf32>
    %144 = vector.extract_strided_slice %7 {offsets = [6, 0], sizes = [2, 32], strides = [1, 1]} : vector<16x32xf32> to vector<2x32xf32>
    %145 = arith.addf %144, %143 : vector<2x32xf32>
    %146 = arith.negf %145 : vector<2x32xf32>
    %147 = math.exp %146 : vector<2x32xf32>
    %cst_34 = arith.constant 1.000000e+00 : f32
    %148 = vector.broadcast %cst_34 : f32 to vector<2x32xf32>
    %149 = arith.addf %148, %147 : vector<2x32xf32>
    %150 = arith.divf %148, %149 : vector<2x32xf32>
    %151 = vector.extract_strided_slice %150 {offsets = [0, 0], sizes = [2, 8], strides = [1, 1]} : vector<2x32xf32> to vector<2x8xf32>
    %152 = vector.extract_strided_slice %150 {offsets = [0, 8], sizes = [2, 8], strides = [1, 1]} : vector<2x32xf32> to vector<2x8xf32>
    %153 = vector.extract_strided_slice %150 {offsets = [0, 16], sizes = [2, 8], strides = [1, 1]} : vector<2x32xf32> to vector<2x8xf32>
    %cst_35 = arith.constant 2.000000e+00 : f32
    %154 = vector.broadcast %cst_35 : f32 to vector<2x8xf32>
    %155 = arith.mulf %154, %153 : vector<2x8xf32>
    %cst_36 = arith.constant 1.000000e+00 : f32
    %156 = vector.broadcast %cst_36 : f32 to vector<2x8xf32>
    %157 = arith.subf %155, %156 : vector<2x8xf32>
    %158 = vector.extract_strided_slice %150 {offsets = [0, 24], sizes = [2, 8], strides = [1, 1]} : vector<2x32xf32> to vector<2x8xf32>
    %159 = arith.mulf %152, %117 : vector<2x8xf32>
    %160 = arith.mulf %151, %157 : vector<2x8xf32>
    %161 = arith.addf %159, %160 : vector<2x8xf32>
    %162 = math.tanh %161 : vector<2x8xf32>
    %163 = arith.mulf %158, %162 : vector<2x8xf32>
    %164 = tpu.concatenate %163, %142 in 1 : vector<2x8xf32>, vector<2x32xf32> -> vector<2x40xf32>
    %cst_37 = arith.constant dense<0.000000e+00> : vector<2x160xf32>
    %165 = tpu.matmul %164, %0, %cst_37 {dimension_numbers = #tpu.dot_dimension_numbers<[1], [0], [0], [1], [0, 0, 1, 1], [], []>} : vector<2x40xf32>, vector<40x160xf32>, vector<2x160xf32> -> vector<2x160xf32>
    %166 = vector.extract_strided_slice %165 {offsets = [0, 0], sizes = [2, 128], strides = [1, 1]} : vector<2x160xf32> to vector<2x128xf32>
    %167 = vector.broadcast %1 : vector<1x128xf32> to vector<2x128xf32>
    %168 = arith.addf %166, %167 : vector<2x128xf32>
    %169 = arith.negf %168 : vector<2x128xf32>
    %170 = math.exp %169 : vector<2x128xf32>
    %cst_38 = arith.constant 1.000000e+00 : f32
    %171 = vector.broadcast %cst_38 : f32 to vector<2x128xf32>
    %172 = arith.addf %171, %170 : vector<2x128xf32>
    %173 = arith.divf %171, %172 : vector<2x128xf32>
    %174 = vector.extract_strided_slice %173 {offsets = [0, 0], sizes = [2, 32], strides = [1, 1]} : vector<2x128xf32> to vector<2x32xf32>
    %175 = vector.extract_strided_slice %173 {offsets = [0, 32], sizes = [2, 32], strides = [1, 1]} : vector<2x128xf32> to vector<2x32xf32>
    %176 = vector.extract_strided_slice %173 {offsets = [0, 64], sizes = [2, 32], strides = [1, 1]} : vector<2x128xf32> to vector<2x32xf32>
    %cst_39 = arith.constant 2.000000e+00 : f32
    %177 = vector.broadcast %cst_39 : f32 to vector<2x32xf32>
    %178 = arith.mulf %177, %176 : vector<2x32xf32>
    %cst_40 = arith.constant 1.000000e+00 : f32
    %179 = vector.broadcast %cst_40 : f32 to vector<2x32xf32>
    %180 = arith.subf %178, %179 : vector<2x32xf32>
    %181 = vector.extract_strided_slice %173 {offsets = [0, 96], sizes = [2, 32], strides = [1, 1]} : vector<2x128xf32> to vector<2x32xf32>
    %182 = arith.mulf %175, %140 : vector<2x32xf32>
    %183 = arith.mulf %174, %180 : vector<2x32xf32>
    %184 = arith.addf %182, %183 : vector<2x32xf32>
    %185 = math.tanh %184 : vector<2x32xf32>
    %186 = arith.mulf %181, %185 : vector<2x32xf32>
    %187 = vector.extract_strided_slice %165 {offsets = [0, 128], sizes = [2, 32], strides = [1, 1]} : vector<2x160xf32> to vector<2x32xf32>
    %188 = vector.extract_strided_slice %7 {offsets = [8, 0], sizes = [2, 32], strides = [1, 1]} : vector<16x32xf32> to vector<2x32xf32>
    %189 = arith.addf %188, %187 : vector<2x32xf32>
    %190 = arith.negf %189 : vector<2x32xf32>
    %191 = math.exp %190 : vector<2x32xf32>
    %cst_41 = arith.constant 1.000000e+00 : f32
    %192 = vector.broadcast %cst_41 : f32 to vector<2x32xf32>
    %193 = arith.addf %192, %191 : vector<2x32xf32>
    %194 = arith.divf %192, %193 : vector<2x32xf32>
    %195 = vector.extract_strided_slice %194 {offsets = [0, 0], sizes = [2, 8], strides = [1, 1]} : vector<2x32xf32> to vector<2x8xf32>
    %196 = vector.extract_strided_slice %194 {offsets = [0, 8], sizes = [2, 8], strides = [1, 1]} : vector<2x32xf32> to vector<2x8xf32>
    %197 = vector.extract_strided_slice %194 {offsets = [0, 16], sizes = [2, 8], strides = [1, 1]} : vector<2x32xf32> to vector<2x8xf32>
    %cst_42 = arith.constant 2.000000e+00 : f32
    %198 = vector.broadcast %cst_42 : f32 to vector<2x8xf32>
    %199 = arith.mulf %198, %197 : vector<2x8xf32>
    %cst_43 = arith.constant 1.000000e+00 : f32
    %200 = vector.broadcast %cst_43 : f32 to vector<2x8xf32>
    %201 = arith.subf %199, %200 : vector<2x8xf32>
    %202 = vector.extract_strided_slice %194 {offsets = [0, 24], sizes = [2, 8], strides = [1, 1]} : vector<2x32xf32> to vector<2x8xf32>
    %203 = arith.mulf %196, %161 : vector<2x8xf32>
    %204 = arith.mulf %195, %201 : vector<2x8xf32>
    %205 = arith.addf %203, %204 : vector<2x8xf32>
    %206 = math.tanh %205 : vector<2x8xf32>
    %207 = arith.mulf %202, %206 : vector<2x8xf32>
    %208 = tpu.concatenate %207, %186 in 1 : vector<2x8xf32>, vector<2x32xf32> -> vector<2x40xf32>
    %cst_44 = arith.constant dense<0.000000e+00> : vector<2x160xf32>
    %209 = tpu.matmul %208, %0, %cst_44 {dimension_numbers = #tpu.dot_dimension_numbers<[1], [0], [0], [1], [0, 0, 1, 1], [], []>} : vector<2x40xf32>, vector<40x160xf32>, vector<2x160xf32> -> vector<2x160xf32>
    %210 = vector.extract_strided_slice %209 {offsets = [0, 0], sizes = [2, 128], strides = [1, 1]} : vector<2x160xf32> to vector<2x128xf32>
    %211 = vector.broadcast %1 : vector<1x128xf32> to vector<2x128xf32>
    %212 = arith.addf %210, %211 : vector<2x128xf32>
    %213 = arith.negf %212 : vector<2x128xf32>
    %214 = math.exp %213 : vector<2x128xf32>
    %cst_45 = arith.constant 1.000000e+00 : f32
    %215 = vector.broadcast %cst_45 : f32 to vector<2x128xf32>
    %216 = arith.addf %215, %214 : vector<2x128xf32>
    %217 = arith.divf %215, %216 : vector<2x128xf32>
    %218 = vector.extract_strided_slice %217 {offsets = [0, 0], sizes = [2, 32], strides = [1, 1]} : vector<2x128xf32> to vector<2x32xf32>
    %219 = vector.extract_strided_slice %217 {offsets = [0, 32], sizes = [2, 32], strides = [1, 1]} : vector<2x128xf32> to vector<2x32xf32>
    %220 = vector.extract_strided_slice %217 {offsets = [0, 64], sizes = [2, 32], strides = [1, 1]} : vector<2x128xf32> to vector<2x32xf32>
    %cst_46 = arith.constant 2.000000e+00 : f32
    %221 = vector.broadcast %cst_46 : f32 to vector<2x32xf32>
    %222 = arith.mulf %221, %220 : vector<2x32xf32>
    %cst_47 = arith.constant 1.000000e+00 : f32
    %223 = vector.broadcast %cst_47 : f32 to vector<2x32xf32>
    %224 = arith.subf %222, %223 : vector<2x32xf32>
    %225 = vector.extract_strided_slice %217 {offsets = [0, 96], sizes = [2, 32], strides = [1, 1]} : vector<2x128xf32> to vector<2x32xf32>
    %226 = arith.mulf %219, %184 : vector<2x32xf32>
    %227 = arith.mulf %218, %224 : vector<2x32xf32>
    %228 = arith.addf %226, %227 : vector<2x32xf32>
    %229 = math.tanh %228 : vector<2x32xf32>
    %230 = arith.mulf %225, %229 : vector<2x32xf32>
    %231 = vector.extract_strided_slice %209 {offsets = [0, 128], sizes = [2, 32], strides = [1, 1]} : vector<2x160xf32> to vector<2x32xf32>
    %232 = vector.extract_strided_slice %7 {offsets = [10, 0], sizes = [2, 32], strides = [1, 1]} : vector<16x32xf32> to vector<2x32xf32>
    %233 = arith.addf %232, %231 : vector<2x32xf32>
    %234 = arith.negf %233 : vector<2x32xf32>
    %235 = math.exp %234 : vector<2x32xf32>
    %cst_48 = arith.constant 1.000000e+00 : f32
    %236 = vector.broadcast %cst_48 : f32 to vector<2x32xf32>
    %237 = arith.addf %236, %235 : vector<2x32xf32>
    %238 = arith.divf %236, %237 : vector<2x32xf32>
    %239 = vector.extract_strided_slice %238 {offsets = [0, 0], sizes = [2, 8], strides = [1, 1]} : vector<2x32xf32> to vector<2x8xf32>
    %240 = vector.extract_strided_slice %238 {offsets = [0, 8], sizes = [2, 8], strides = [1, 1]} : vector<2x32xf32> to vector<2x8xf32>
    %241 = vector.extract_strided_slice %238 {offsets = [0, 16], sizes = [2, 8], strides = [1, 1]} : vector<2x32xf32> to vector<2x8xf32>
    %cst_49 = arith.constant 2.000000e+00 : f32
    %242 = vector.broadcast %cst_49 : f32 to vector<2x8xf32>
    %243 = arith.mulf %242, %241 : vector<2x8xf32>
    %cst_50 = arith.constant 1.000000e+00 : f32
    %244 = vector.broadcast %cst_50 : f32 to vector<2x8xf32>
    %245 = arith.subf %243, %244 : vector<2x8xf32>
    %246 = vector.extract_strided_slice %238 {offsets = [0, 24], sizes = [2, 8], strides = [1, 1]} : vector<2x32xf32> to vector<2x8xf32>
    %247 = arith.mulf %240, %205 : vector<2x8xf32>
    %248 = arith.mulf %239, %245 : vector<2x8xf32>
    %249 = arith.addf %247, %248 : vector<2x8xf32>
    %250 = math.tanh %249 : vector<2x8xf32>
    %251 = arith.mulf %246, %250 : vector<2x8xf32>
    %252 = tpu.concatenate %251, %230 in 1 : vector<2x8xf32>, vector<2x32xf32> -> vector<2x40xf32>
    %cst_51 = arith.constant dense<0.000000e+00> : vector<2x160xf32>
    %253 = tpu.matmul %252, %0, %cst_51 {dimension_numbers = #tpu.dot_dimension_numbers<[1], [0], [0], [1], [0, 0, 1, 1], [], []>} : vector<2x40xf32>, vector<40x160xf32>, vector<2x160xf32> -> vector<2x160xf32>
    %254 = vector.extract_strided_slice %253 {offsets = [0, 0], sizes = [2, 128], strides = [1, 1]} : vector<2x160xf32> to vector<2x128xf32>
    %255 = vector.broadcast %1 : vector<1x128xf32> to vector<2x128xf32>
    %256 = arith.addf %254, %255 : vector<2x128xf32>
    %257 = arith.negf %256 : vector<2x128xf32>
    %258 = math.exp %257 : vector<2x128xf32>
    %cst_52 = arith.constant 1.000000e+00 : f32
    %259 = vector.broadcast %cst_52 : f32 to vector<2x128xf32>
    %260 = arith.addf %259, %258 : vector<2x128xf32>
    %261 = arith.divf %259, %260 : vector<2x128xf32>
    %262 = vector.extract_strided_slice %261 {offsets = [0, 0], sizes = [2, 32], strides = [1, 1]} : vector<2x128xf32> to vector<2x32xf32>
    %263 = vector.extract_strided_slice %261 {offsets = [0, 32], sizes = [2, 32], strides = [1, 1]} : vector<2x128xf32> to vector<2x32xf32>
    %264 = vector.extract_strided_slice %261 {offsets = [0, 64], sizes = [2, 32], strides = [1, 1]} : vector<2x128xf32> to vector<2x32xf32>
    %cst_53 = arith.constant 2.000000e+00 : f32
    %265 = vector.broadcast %cst_53 : f32 to vector<2x32xf32>
    %266 = arith.mulf %265, %264 : vector<2x32xf32>
    %cst_54 = arith.constant 1.000000e+00 : f32
    %267 = vector.broadcast %cst_54 : f32 to vector<2x32xf32>
    %268 = arith.subf %266, %267 : vector<2x32xf32>
    %269 = vector.extract_strided_slice %261 {offsets = [0, 96], sizes = [2, 32], strides = [1, 1]} : vector<2x128xf32> to vector<2x32xf32>
    %270 = arith.mulf %263, %228 : vector<2x32xf32>
    %271 = arith.mulf %262, %268 : vector<2x32xf32>
    %272 = arith.addf %270, %271 : vector<2x32xf32>
    %273 = math.tanh %272 : vector<2x32xf32>
    %274 = arith.mulf %269, %273 : vector<2x32xf32>
    %275 = vector.extract_strided_slice %253 {offsets = [0, 128], sizes = [2, 32], strides = [1, 1]} : vector<2x160xf32> to vector<2x32xf32>
    %276 = vector.extract_strided_slice %7 {offsets = [12, 0], sizes = [2, 32], strides = [1, 1]} : vector<16x32xf32> to vector<2x32xf32>
    %277 = arith.addf %276, %275 : vector<2x32xf32>
    %278 = arith.negf %277 : vector<2x32xf32>
    %279 = math.exp %278 : vector<2x32xf32>
    %cst_55 = arith.constant 1.000000e+00 : f32
    %280 = vector.broadcast %cst_55 : f32 to vector<2x32xf32>
    %281 = arith.addf %280, %279 : vector<2x32xf32>
    %282 = arith.divf %280, %281 : vector<2x32xf32>
    %283 = vector.extract_strided_slice %282 {offsets = [0, 0], sizes = [2, 8], strides = [1, 1]} : vector<2x32xf32> to vector<2x8xf32>
    %284 = vector.extract_strided_slice %282 {offsets = [0, 8], sizes = [2, 8], strides = [1, 1]} : vector<2x32xf32> to vector<2x8xf32>
    %285 = vector.extract_strided_slice %282 {offsets = [0, 16], sizes = [2, 8], strides = [1, 1]} : vector<2x32xf32> to vector<2x8xf32>
    %cst_56 = arith.constant 2.000000e+00 : f32
    %286 = vector.broadcast %cst_56 : f32 to vector<2x8xf32>
    %287 = arith.mulf %286, %285 : vector<2x8xf32>
    %cst_57 = arith.constant 1.000000e+00 : f32
    %288 = vector.broadcast %cst_57 : f32 to vector<2x8xf32>
    %289 = arith.subf %287, %288 : vector<2x8xf32>
    %290 = vector.extract_strided_slice %282 {offsets = [0, 24], sizes = [2, 8], strides = [1, 1]} : vector<2x32xf32> to vector<2x8xf32>
    %291 = arith.mulf %284, %249 : vector<2x8xf32>
    %292 = arith.mulf %283, %289 : vector<2x8xf32>
    %293 = arith.addf %291, %292 : vector<2x8xf32>
    %294 = math.tanh %293 : vector<2x8xf32>
    %295 = arith.mulf %290, %294 : vector<2x8xf32>
    %296 = tpu.concatenate %295, %274 in 1 : vector<2x8xf32>, vector<2x32xf32> -> vector<2x40xf32>
    %cst_58 = arith.constant dense<0.000000e+00> : vector<2x160xf32>
    %297 = tpu.matmul %296, %0, %cst_58 {dimension_numbers = #tpu.dot_dimension_numbers<[1], [0], [0], [1], [0, 0, 1, 1], [], []>} : vector<2x40xf32>, vector<40x160xf32>, vector<2x160xf32> -> vector<2x160xf32>
    %298 = vector.extract_strided_slice %297 {offsets = [0, 0], sizes = [2, 128], strides = [1, 1]} : vector<2x160xf32> to vector<2x128xf32>
    %299 = vector.broadcast %1 : vector<1x128xf32> to vector<2x128xf32>
    %300 = arith.addf %298, %299 : vector<2x128xf32>
    %301 = arith.negf %300 : vector<2x128xf32>
    %302 = math.exp %301 : vector<2x128xf32>
    %cst_59 = arith.constant 1.000000e+00 : f32
    %303 = vector.broadcast %cst_59 : f32 to vector<2x128xf32>
    %304 = arith.addf %303, %302 : vector<2x128xf32>
    %305 = arith.divf %303, %304 : vector<2x128xf32>
    %306 = vector.extract_strided_slice %305 {offsets = [0, 0], sizes = [2, 32], strides = [1, 1]} : vector<2x128xf32> to vector<2x32xf32>
    %307 = vector.extract_strided_slice %305 {offsets = [0, 32], sizes = [2, 32], strides = [1, 1]} : vector<2x128xf32> to vector<2x32xf32>
    %308 = vector.extract_strided_slice %305 {offsets = [0, 64], sizes = [2, 32], strides = [1, 1]} : vector<2x128xf32> to vector<2x32xf32>
    %cst_60 = arith.constant 2.000000e+00 : f32
    %309 = vector.broadcast %cst_60 : f32 to vector<2x32xf32>
    %310 = arith.mulf %309, %308 : vector<2x32xf32>
    %cst_61 = arith.constant 1.000000e+00 : f32
    %311 = vector.broadcast %cst_61 : f32 to vector<2x32xf32>
    %312 = arith.subf %310, %311 : vector<2x32xf32>
    %313 = vector.extract_strided_slice %305 {offsets = [0, 96], sizes = [2, 32], strides = [1, 1]} : vector<2x128xf32> to vector<2x32xf32>
    %314 = arith.mulf %307, %272 : vector<2x32xf32>
    %315 = arith.mulf %306, %312 : vector<2x32xf32>
    %316 = arith.addf %314, %315 : vector<2x32xf32>
    %317 = math.tanh %316 : vector<2x32xf32>
    %318 = arith.mulf %313, %317 : vector<2x32xf32>
    %319 = vector.extract_strided_slice %297 {offsets = [0, 128], sizes = [2, 32], strides = [1, 1]} : vector<2x160xf32> to vector<2x32xf32>
    %320 = vector.extract_strided_slice %7 {offsets = [14, 0], sizes = [2, 32], strides = [1, 1]} : vector<16x32xf32> to vector<2x32xf32>
    %321 = arith.addf %320, %319 : vector<2x32xf32>
    %322 = arith.negf %321 : vector<2x32xf32>
    %323 = math.exp %322 : vector<2x32xf32>
    %cst_62 = arith.constant 1.000000e+00 : f32
    %324 = vector.broadcast %cst_62 : f32 to vector<2x32xf32>
    %325 = arith.addf %324, %323 : vector<2x32xf32>
    %326 = arith.divf %324, %325 : vector<2x32xf32>
    %327 = vector.extract_strided_slice %326 {offsets = [0, 0], sizes = [2, 8], strides = [1, 1]} : vector<2x32xf32> to vector<2x8xf32>
    %328 = vector.extract_strided_slice %326 {offsets = [0, 8], sizes = [2, 8], strides = [1, 1]} : vector<2x32xf32> to vector<2x8xf32>
    %329 = vector.extract_strided_slice %326 {offsets = [0, 16], sizes = [2, 8], strides = [1, 1]} : vector<2x32xf32> to vector<2x8xf32>
    %cst_63 = arith.constant 2.000000e+00 : f32
    %330 = vector.broadcast %cst_63 : f32 to vector<2x8xf32>
    %331 = arith.mulf %330, %329 : vector<2x8xf32>
    %cst_64 = arith.constant 1.000000e+00 : f32
    %332 = vector.broadcast %cst_64 : f32 to vector<2x8xf32>
    %333 = arith.subf %331, %332 : vector<2x8xf32>
    %334 = vector.extract_strided_slice %326 {offsets = [0, 24], sizes = [2, 8], strides = [1, 1]} : vector<2x32xf32> to vector<2x8xf32>
    %335 = arith.mulf %328, %293 : vector<2x8xf32>
    %336 = arith.mulf %327, %333 : vector<2x8xf32>
    %337 = arith.addf %335, %336 : vector<2x8xf32>
    %338 = math.tanh %337 : vector<2x8xf32>
    %339 = arith.mulf %334, %338 : vector<2x8xf32>
    %340 = tpu.concatenate %339, %318 in 1 : vector<2x8xf32>, vector<2x32xf32> -> vector<2x40xf32>
    %cst_65 = arith.constant dense<0.000000e+00> : vector<2x160xf32>
    %341 = tpu.matmul %340, %0, %cst_65 {dimension_numbers = #tpu.dot_dimension_numbers<[1], [0], [0], [1], [0, 0, 1, 1], [], []>} : vector<2x40xf32>, vector<40x160xf32>, vector<2x160xf32> -> vector<2x160xf32>
    %342 = vector.extract_strided_slice %341 {offsets = [0, 0], sizes = [2, 128], strides = [1, 1]} : vector<2x160xf32> to vector<2x128xf32>
    %343 = vector.broadcast %1 : vector<1x128xf32> to vector<2x128xf32>
    %344 = arith.addf %342, %343 : vector<2x128xf32>
    %345 = arith.negf %344 : vector<2x128xf32>
    %346 = math.exp %345 : vector<2x128xf32>
    %cst_66 = arith.constant 1.000000e+00 : f32
    %347 = vector.broadcast %cst_66 : f32 to vector<2x128xf32>
    %348 = arith.addf %347, %346 : vector<2x128xf32>
    %349 = arith.divf %347, %348 : vector<2x128xf32>
    %350 = vector.extract_strided_slice %349 {offsets = [0, 0], sizes = [2, 32], strides = [1, 1]} : vector<2x128xf32> to vector<2x32xf32>
    %351 = vector.extract_strided_slice %349 {offsets = [0, 32], sizes = [2, 32], strides = [1, 1]} : vector<2x128xf32> to vector<2x32xf32>
    %352 = vector.extract_strided_slice %349 {offsets = [0, 64], sizes = [2, 32], strides = [1, 1]} : vector<2x128xf32> to vector<2x32xf32>
    %cst_67 = arith.constant 2.000000e+00 : f32
    %353 = vector.broadcast %cst_67 : f32 to vector<2x32xf32>
    %354 = arith.mulf %353, %352 : vector<2x32xf32>
    %cst_68 = arith.constant 1.000000e+00 : f32
    %355 = vector.broadcast %cst_68 : f32 to vector<2x32xf32>
    %356 = arith.subf %354, %355 : vector<2x32xf32>
    %357 = vector.extract_strided_slice %349 {offsets = [0, 96], sizes = [2, 32], strides = [1, 1]} : vector<2x128xf32> to vector<2x32xf32>
    %358 = arith.mulf %351, %316 : vector<2x32xf32>
    %359 = arith.mulf %350, %356 : vector<2x32xf32>
    %360 = arith.addf %358, %359 : vector<2x32xf32>
    %361 = math.tanh %360 : vector<2x32xf32>
    %362 = arith.mulf %357, %361 : vector<2x32xf32>
    %c0_69 = arith.constant 0 : index
    %c0_70 = arith.constant 0 : index
    %363 = vector.load %arg5[%c0_69, %c0_70] : memref<2x32xf32, #tpu.memory_space<vmem>>, vector<2x32xf32>
    tpu.vector_store %arg5[%c0_69, %c0_70], %362 {strides = array<i32>} : memref<2x32xf32, #tpu.memory_space<vmem>>, vector<2x32xf32>,
    return
  }
}

</mosaic_0001>

<llo_original>
// kernel: mul.26
$region0: #{mul.26}
  #allocation0 [shape = 's32[1]{0}', space=sflag, size = 0x4, scoped, tag = 'scoped memory for mul.26']
  %s0 = inlined_call_operand.vmem [shape: f32[1,32], index: 0, kind: input, shape index: {}]
  %s1 = inlined_call_operand.vmem [shape: f32[1,32], index: 1, kind: input, shape index: {}]
  %s2 = inlined_call_operand.vmem [shape: f32[1,32], index: 2, kind: output, shape index: {}]
  %v3 = vld [vmem:[%s0] sm:$0x1]
  %v4 = vld [vmem:[%s1] sm:$0x1]
  %5 = xla_tuple %v3, %v4
  %6 = xla_tuple %5
  %v7 = vmul.f32 %v3, %v4
  %8 = xla_tuple %v7
  %9 = vst [vmem:[%s2] sm:$0x1] %v7

// kernel: mul.35
$region0: #{mul.35}
  #allocation0 [shape = 's32[1]{0}', space=sflag, size = 0x4, scoped, tag = 'scoped memory for mul.35']
  %s0 = inlined_call_operand.vmem [shape: f32[1,128], index: 0, kind: input, shape index: {}]
  %s1 = inlined_call_operand.vmem [shape: f32[1,128], index: 1, kind: input, shape index: {}]
  %s2 = inlined_call_operand.vmem [shape: f32[1,128], index: 2, kind: output, shape index: {}]
  %v3 = vld [vmem:[%s0] sm:$0x1]
  %v4 = vld [vmem:[%s1] sm:$0x1]
  %5 = xla_tuple %v3, %v4
  %6 = xla_tuple %5
  %v7 = vmul.f32 %v3, %v4
  %8 = xla_tuple %v7
  %9 = vst [vmem:[%s2] sm:$0x1] %v7

// kernel: encoder_forward.1
$region0: #{encoder_forward.1}
  #allocation0 [shape = 'u32[]', space=smem, size = 0x4, offset = 0x4, fixed_abs, tag = 'smem constant byte address 0x4 - core index']
  #allocation1 [shape = 'u32[144,128]{1,0:T(1,128)}', space=vmem, size = 0x12000, scoped, tag = 'internal scratch']
  %s0 = inlined_call_operand.vmem [shape: f32[16,32], index: 0, kind: input, shape index: {}]
  %s1 = inlined_call_operand.vmem [shape: f32[32,32], index: 1, kind: input, shape index: {}]
  %s2 = inlined_call_operand.vmem [shape: f32[1,32], index: 2, kind: input, shape index: {}]
  %s3 = inlined_call_operand.vmem [shape: f32[40,160], index: 3, kind: input, shape index: {}]
  %s4 = inlined_call_operand.vmem [shape: f32[1,128], index: 4, kind: input, shape index: {}]
  %s5 = inlined_call_operand.hbm [shape: f32[2,32], index: 5, kind: output, shape index: {}]
  %s6 = sld [smem:[#allocation0]]
  $region30: #{encoder_forward.1} parent=0
    _
  %s8 = ssub.s32 1, %s6
  %s9 = scalar_select 0, %s8, %s6
  $region1: #{encoder_forward.1} parent=0
    #allocation2 [shape = 'u8[1024]{0}', space=vmem, size = 0x400, scoped, tag = 'output window, operand 0, single buffered']
    #allocation3 [shape = 's32[1]{0}', space=sflag, size = 0x4, scoped, tag = 'scoped memory for encoder_forward.1']
    %10 = vsyncpa [#allocation3], 0
    // Predicated region
    $region2: #{encoder_forward.1} parent=1 // pred_check
      _
    $region3: #{encoder_forward.1} parent=1 // pred_check_branch
      %12 = sbr.rel (0) target = $region5
    $region4: #{encoder_forward.1} parent=1 // pred_region
      _
    $region5: #{encoder_forward.1} parent=1 // pred_fallthru
      _
    // Predicated region
    $region6: #{encoder_forward.1} parent=1 // pred_check
      _
    $region7: #{encoder_forward.1} parent=1 // pred_check_branch
      %14 = sbr.rel (0) target = $region9
    $region8: #{encoder_forward.1} parent=1 // pred_region
      _
    $region9: #{encoder_forward.1} parent=1 // pred_fallthru
      _
    // Predicated region
    $region10: #{encoder_forward.1} parent=1 // pred_check
      _
    $region11: #{encoder_forward.1} parent=1 // pred_check_branch
      %16 = sbr.rel (0) target = $region13
    $region12: #{encoder_forward.1} parent=1 // pred_region
      _
    $region13: #{encoder_forward.1} parent=1 // pred_fallthru
      _
    // Predicated region
    $region14: #{encoder_forward.1} parent=1 // pred_check
      _
    $region15: #{encoder_forward.1} parent=1 // pred_check_branch
      %18 = sbr.rel (0) target = $region17
    $region16: #{encoder_forward.1} parent=1 // pred_region
      _
    $region17: #{encoder_forward.1} parent=1 // pred_fallthru
      _
    // Predicated region
    $region18: #{encoder_forward.1} parent=1 // pred_check
      _
    $region19: #{encoder_forward.1} parent=1 // pred_check_branch
      %20 = sbr.rel (0) target = $region21
    $region20: #{encoder_forward.1} parent=1 // pred_region
      _
    $region21: #{encoder_forward.1} parent=1 // pred_fallthru
      _
    %v21 = vld [vmem:[%s3] sm:$0xff]
    %v22 = vld [vmem:[%s3 + $0x8] sm:$0xff]
    %v23 = vld [vmem:[%s3 + $0x10] sm:$0xff]
    %v24 = vld [vmem:[%s3 + $0x18] sm:$0xff]
    %v25 = vld [vmem:[%s3 + $0x20] sm:$0xff]
    %v26 = vld [vmem:[%s3 + $0x28] sm:$0xff]
    %v27 = vld [vmem:[%s3 + $0x30] sm:$0xff]
    %v28 = vld [vmem:[%s3 + $0x38] sm:$0xff]
    %v29 = vld [vmem:[%s3 + $0x40] sm:$0xff]
    %v30 = vld [vmem:[%s3 + $0x48] sm:$0xff]
    %v31 = vld [vmem:[%s4] sm:$0x1]
    %v32 = vld [vmem:[%s0] sm:$0xff]
    %v33 = vld [vmem:[%s0 + $0x8] sm:$0xff]
    %v34 = vld [vmem:[%s1] sm:$0xff]
    %v35 = vld [vmem:[%s1 + $0x8] sm:$0xff]
    %v36 = vld [vmem:[%s1 + $0x10] sm:$0xff]
    %v37 = vld [vmem:[%s1 + $0x18] sm:$0xff]
    %v38 = vld [vmem:[%s2] sm:$0x1]
    %v40 = vlaneseq
    %v41 = vshrl.u32 %v40, 7
    %v42 = vsub.s32 0, %v41
    %v43 = vrot.slane %v38, %v42
    %vm45 = vcmask 261120
    %v47 = vsel %vm45, %v32, 0
    %v50 = vsel %vm45, %v33, 0
    %52 = vmatprep.subr.mxu0 0.0
    %53 = vmatpush1.msra.mxu0 %v34
    %54 = vmatprep.subr.mxu0 0.0
    %55 = vmatpush1.msra.mxu0 %v35
    %56 = vmatprep.subr.mxu0 0.0
    %57 = vmatpush1.msra.mxu0 %v36
    %58 = vmatprep.subr.mxu0 0.0
    %59 = vmatpush1.msra.mxu0 %v37
    %60 = vmatprep.subr.mxu0 0.0
    %61 = vmatpush1.msra.mxu0 0.0
    %62 = vmatprep.subr.mxu0 0.0
    %63 = vmatpush1.msra.mxu0 0.0
    %64 = vmatprep.subr.mxu0 0.0
    %65 = vmatpush1.msra.mxu0 0.0
    %66 = vmatprep.subr.mxu0 0.0
    %67 = vmatpush1.msra.mxu0 0.0
    %68 = vmatprep.subr.mxu0 0.0
    %69 = vmatpush1.msra.mxu0 0.0
    %70 = vmatprep.subr.mxu0 0.0
    %71 = vmatpush1.msra.mxu0 0.0
    %72 = vmatprep.subr.mxu0 0.0
    %73 = vmatpush1.msra.mxu0 0.0
    %74 = vmatprep.subr.mxu0 0.0
    %75 = vmatpush1.msra.mxu0 0.0
    %76 = vmatprep.subr.mxu0 0.0
    %77 = vmatpush1.msra.mxu0 0.0
    %78 = vmatprep.subr.mxu0 0.0
    %79 = vmatpush1.msra.mxu0 0.0
    %80 = vmatprep.subr.mxu0 0.0
    %81 = vmatpush1.msra.mxu0 0.0
    %82 = vmatprep.subr.mxu0 0.0
    %83 = vmatpush1.msra.mxu0 0.0
    %84 = vmatprep.subr.mxu0 0.0
    %85 = vmatpush1.msra.mxu0 0.0
    %86 = vmatprep.subr.mxu0 0.0
    %87 = vmatpush1.msra.mxu0 0.0
    %88 = vmatprep.subr.mxu0 0.0
    %89 = vmatpush1.msra.mxu0 0.0
    %90 = vmatprep.subr.mxu0 0.0
    %91 = vmatpush1.msra.mxu0 0.0
    %92 = vmatprep.subr.mxu0 0.0
    %93 = vmatpush1.msra.mxu0 0.0
    %94 = vmatprep.subr.mxu0 0.0
    %95 = vmatpush1.msra.mxu0 0.0
    %96 = vmatprep.subr.mxu0 0.0
    %97 = vmatpush1.msra.mxu0 0.0
    %98 = vmatprep.subr.mxu0 0.0
    %99 = vmatpush1.msra.mxu0 0.0
    %100 = vmatprep.subr.mxu0 0.0
    %101 = vmatpush1.msra.mxu0 0.0
    %102 = vmatprep.subr.mxu0 0.0
    %103 = vmatpush1.msra.mxu0 0.0
    %104 = vmatprep.subr.mxu0 0.0
    %105 = vmatpush1.msra.mxu0 0.0
    %106 = vmatprep.subr.mxu0 0.0
    %107 = vmatpush1.msra.mxu0 0.0
    %108 = vmatprep.subr.mxu0 0.0
    %109 = vmatpush1.msra.mxu0 0.0
    %110 = vmatprep.subr.mxu0 0.0
    %111 = vmatpush1.msra.mxu0 0.0
    %112 = vmatprep.subr.mxu0 0.0
    %113 = vmatpush1.msra.mxu0 0.0
    %114 = vmatprep.subr.mxu0 0.0
    %115 = vmatpush1.msra.mxu0 0.0
    %116 = vmatprep.mubr.f32.mxu0 0.0
    %117 = vmatmul.mubr.f32.gmra.mrb[0].mxu0 %v47
    %v118 = vpop.f32.mrb[0].mxu0
    %v119 = vadd.f32 %v43, %v118
    %v120 = vpop.f32.mrb[0].mxu0
    %121 = vmatprep.mubr.f32.mxu0 0.0
    %122 = vmatmul.mubr.f32.gmra.mrb[0].mxu0 %v50
    %v123 = vpop.f32.mrb[0].mxu0
    %v124 = vadd.f32 %v43, %v123
    %v125 = vpop.f32.mrb[0].mxu0
    %126 = vdwg.mxu0
    %v127 = vadd.f32 %v119, 0.0
    %v128 = vxor.u32 %v127, 2147483648
    %v129 = vmul.f32 %v128, 1.442695
    %v130 = vpow.pop %v129
    %v131 = vadd.f32 %v130, 1.0
    %v132 = vrcp.pop %v131
    %v133 = vmul.f32 1.0, %v132
    %v134 = vmul.f32 %v133, 2.0
    %v135 = vsub.f32 %v134, 1.0
    %v136 = vmul.f32 %v133, 0.0
    %138 = vrot.lane.b32.xlu0 %v135, 112
    %v139 = vpop.permute.xlu0 %138
    %v141 = vmul.f32 %v133, %v139
    %143 = vrot.lane.b32.xlu0 %v141, 8
    %v144 = vpop.permute.xlu0 %143
    %v146 = vadd.f32 %v136, %v144
    %v147 = vtanh.pop %v146
    %149 = vrot.lane.b32.xlu0 %v147, 16
    %v150 = vpop.permute.xlu0 %149
    %v152 = vmul.f32 %v133, %v150
    %154 = vrot.lane.b32.xlu0 %v152, 104
    %v155 = vpop.permute.xlu0 %154
    %vm157 = vcmask 64512
    %v158 = vsel %vm157, %v155, 0.0
    %vm159 = vcmask 326656
    %v161 = vsel %vm159, %v158, 0
    %163 = vmatprep.subr.mxu0 %v22
    %164 = vmatpush1.msra.mxu0 %v21
    %165 = vmatprep.subr.mxu0 %v24
    %166 = vmatpush1.msra.mxu0 %v23
    %167 = vmatprep.subr.mxu0 %v26
    %168 = vmatpush1.msra.mxu0 %v25
    %169 = vmatprep.subr.mxu0 %v28
    %170 = vmatpush1.msra.mxu0 %v27
    %171 = vmatprep.subr.mxu0 %v30
    %172 = vmatpush1.msra.mxu0 %v29
    %173 = vmatprep.subr.mxu0 0.0
    %174 = vmatpush1.msra.mxu0 0.0
    %175 = vmatprep.subr.mxu0 0.0
    %176 = vmatpush1.msra.mxu0 0.0
    %177 = vmatprep.subr.mxu0 0.0
    %178 = vmatpush1.msra.mxu0 0.0
    %179 = vmatprep.subr.mxu0 0.0
    %180 = vmatpush1.msra.mxu0 0.0
    %181 = vmatprep.subr.mxu0 0.0
    %182 = vmatpush1.msra.mxu0 0.0
    %183 = vmatprep.subr.mxu0 0.0
    %184 = vmatpush1.msra.mxu0 0.0
    %185 = vmatprep.subr.mxu0 0.0
    %186 = vmatpush1.msra.mxu0 0.0
    %187 = vmatprep.subr.mxu0 0.0
    %188 = vmatpush1.msra.mxu0 0.0
    %189 = vmatprep.subr.mxu0 0.0
    %190 = vmatpush1.msra.mxu0 0.0
    %191 = vmatprep.subr.mxu0 0.0
    %192 = vmatpush1.msra.mxu0 0.0
    %193 = vmatprep.subr.mxu0 0.0
    %194 = vmatpush1.msra.mxu0 0.0
    %195 = vmatprep.subr.mxu0 0.0
    %196 = vmatpush1.msra.mxu0 0.0
    %197 = vmatprep.subr.mxu0 0.0
    %198 = vmatpush1.msra.mxu0 0.0
    %199 = vmatprep.subr.mxu0 0.0
    %200 = vmatpush1.msra.mxu0 0.0
    %201 = vmatprep.subr.mxu0 0.0
    %202 = vmatpush1.msra.mxu0 0.0
    %203 = vmatprep.subr.mxu0 0.0
    %204 = vmatpush1.msra.mxu0 0.0
    %205 = vmatprep.subr.mxu0 0.0
    %206 = vmatpush1.msra.mxu0 0.0
    %207 = vmatprep.subr.mxu0 0.0
    %208 = vmatpush1.msra.mxu0 0.0
    %209 = vmatprep.subr.mxu0 0.0
    %210 = vmatpush1.msra.mxu0 0.0
    %211 = vmatprep.subr.mxu0 0.0
    %212 = vmatpush1.msra.mxu0 0.0
    %213 = vmatprep.subr.mxu0 0.0
    %214 = vmatpush1.msra.mxu0 0.0
    %215 = vmatprep.subr.mxu0 0.0
    %216 = vmatpush1.msra.mxu0 0.0
    %217 = vmatprep.subr.mxu0 0.0
    %218 = vmatpush1.msra.mxu0 0.0
    %219 = vmatprep.subr.mxu0 0.0
    %220 = vmatpush1.msra.mxu0 0.0
    %221 = vmatprep.subr.mxu0 0.0
    %222 = vmatpush1.msra.mxu0 0.0
    %223 = vmatprep.subr.mxu0 0.0
    %224 = vmatpush1.msra.mxu0 0.0
    %225 = vmatprep.subr.mxu0 0.0
    %226 = vmatpush1.msra.mxu0 0.0
    %227 = vmatprep.mubr.f32.mxu0 0.0
    %228 = vmatmul.mubr.f32.gmra.mrb[0].mxu0 %v161
    %v229 = vpop.f32.mrb[0].mxu0
    %v230 = vadd.f32 0.0, %v229
    %v231 = vpop.f32.mrb[0].mxu0
    %v232 = vadd.f32 0.0, %v231
    %233 = vdwg.mxu0
    %v235 = vlaneseq
    %v236 = vshrl.u32 %v235, 7
    %v237 = vsub.s32 0, %v236
    %v238 = vrot.slane %v31, %v237
    %v240 = vadd.f32 %v230, %v238
    %v241 = vxor.u32 %v240, 2147483648
    %v242 = vmul.f32 %v241, 1.442695
    %v243 = vpow.pop %v242
    %v244 = vadd.f32 %v243, 1.0
    %v245 = vrcp.pop %v244
    %v246 = vmul.f32 1.0, %v245
    %v247 = vmul.f32 %v246, 2.0
    %v248 = vsub.f32 %v247, 1.0
    %v249 = vmul.f32 %v246, 0.0
    %251 = vrot.lane.b32.xlu0 %v248, 64
    %v252 = vpop.permute.xlu0 %251
    %v254 = vmul.f32 %v246, %v252
    %256 = vrot.lane.b32.xlu0 %v254, 32
    %v257 = vpop.permute.xlu0 %256
    %v259 = vadd.f32 %v249, %v257
    %v260 = vtanh.pop %v259
    %262 = vrot.lane.b32.xlu0 %v260, 64
    %v263 = vpop.permute.xlu0 %262
    %v265 = vmul.f32 %v246, %v263
    %v267 = vrot.slane %v232, 6
    %v269 = vadd.f32 %v119, %v267
    %v270 = vxor.u32 %v269, 2147483648
    %v271 = vmul.f32 %v270, 1.442695
    %v272 = vpow.pop %v271
    %v273 = vadd.f32 %v272, 1.0
    %v274 = vrcp.pop %v273
    %v275 = vmul.f32 1.0, %v274
    %v276 = vmul.f32 %v275, 2.0
    %v277 = vsub.f32 %v276, 1.0
    %v279 = vrot.slane %v146, 6
    %v281 = vmul.f32 %v275, %v279
    %283 = vrot.lane.b32.xlu0 %v277, 112
    %v284 = vpop.permute.xlu0 %283
    %v286 = vmul.f32 %v275, %v284
    %288 = vrot.lane.b32.xlu0 %v286, 8
    %v289 = vpop.permute.xlu0 %288
    %v291 = vadd.f32 %v281, %v289
    %v292 = vtanh.pop %v291
    %294 = vrot.lane.b32.xlu0 %v292, 16
    %v295 = vpop.permute.xlu0 %294
    %v297 = vmul.f32 %v275, %v295
    %299 = vrot.lane.b32.xlu0 %v297, 104
    %v300 = vpop.permute.xlu0 %299
    %v303 = vrot.slane %v265, 6
    %304 = vrot.lane.b32.xlu0 %v303, 40
    %v305 = vpop.permute.xlu0 %304
    %v307 = vsel %vm157, %v300, %v305
    %v309 = vrot.slane %v307, 2
    %v310 = vsel %vm159, %v309, 0
    %312 = vmatprep.subr.mxu0 %v22
    %313 = vmatpush1.msra.mxu0 %v21
    %314 = vmatprep.subr.mxu0 %v24
    %315 = vmatpush1.msra.mxu0 %v23
    %316 = vmatprep.subr.mxu0 %v26
    %317 = vmatpush1.msra.mxu0 %v25
    %318 = vmatprep.subr.mxu0 %v28
    %319 = vmatpush1.msra.mxu0 %v27
    %320 = vmatprep.subr.mxu0 %v30
    %321 = vmatpush1.msra.mxu0 %v29
    %322 = vmatprep.subr.mxu0 0.0
    %323 = vmatpush1.msra.mxu0 0.0
    %324 = vmatprep.subr.mxu0 0.0
    %325 = vmatpush1.msra.mxu0 0.0
    %326 = vmatprep.subr.mxu0 0.0
    %327 = vmatpush1.msra.mxu0 0.0
    %328 = vmatprep.subr.mxu0 0.0
    %329 = vmatpush1.msra.mxu0 0.0
    %330 = vmatprep.subr.mxu0 0.0
    %331 = vmatpush1.msra.mxu0 0.0
    %332 = vmatprep.subr.mxu0 0.0
    %333 = vmatpush1.msra.mxu0 0.0
    %334 = vmatprep.subr.mxu0 0.0
    %335 = vmatpush1.msra.mxu0 0.0
    %336 = vmatprep.subr.mxu0 0.0
    %337 = vmatpush1.msra.mxu0 0.0
    %338 = vmatprep.subr.mxu0 0.0
    %339 = vmatpush1.msra.mxu0 0.0
    %340 = vmatprep.subr.mxu0 0.0
    %341 = vmatpush1.msra.mxu0 0.0
    %342 = vmatprep.subr.mxu0 0.0
    %343 = vmatpush1.msra.mxu0 0.0
    %344 = vmatprep.subr.mxu0 0.0
    %345 = vmatpush1.msra.mxu0 0.0
    %346 = vmatprep.subr.mxu0 0.0
    %347 = vmatpush1.msra.mxu0 0.0
    %348 = vmatprep.subr.mxu0 0.0
    %349 = vmatpush1.msra.mxu0 0.0
    %350 = vmatprep.subr.mxu0 0.0
    %351 = vmatpush1.msra.mxu0 0.0
    %352 = vmatprep.subr.mxu0 0.0
    %353 = vmatpush1.msra.mxu0 0.0
    %354 = vmatprep.subr.mxu0 0.0
    %355 = vmatpush1.msra.mxu0 0.0
    %356 = vmatprep.subr.mxu0 0.0
    %357 = vmatpush1.msra.mxu0 0.0
    %358 = vmatprep.subr.mxu0 0.0
    %359 = vmatpush1.msra.mxu0 0.0
    %360 = vmatprep.subr.mxu0 0.0
    %361 = vmatpush1.msra.mxu0 0.0
    %362 = vmatprep.subr.mxu0 0.0
    %363 = vmatpush1.msra.mxu0 0.0
    %364 = vmatprep.subr.mxu0 0.0
    %365 = vmatpush1.msra.mxu0 0.0
    %366 = vmatprep.subr.mxu0 0.0
    %367 = vmatpush1.msra.mxu0 0.0
    %368 = vmatprep.subr.mxu0 0.0
    %369 = vmatpush1.msra.mxu0 0.0
    %370 = vmatprep.subr.mxu0 0.0
    %371 = vmatpush1.msra.mxu0 0.0
    %372 = vmatprep.subr.mxu0 0.0
    %373 = vmatpush1.msra.mxu0 0.0
    %374 = vmatprep.subr.mxu0 0.0
    %375 = vmatpush1.msra.mxu0 0.0
    %376 = vmatprep.mubr.f32.mxu0 0.0
    %377 = vmatmul.mubr.f32.gmra.mrb[0].mxu0 %v310
    %v378 = vpop.f32.mrb[0].mxu0
    %v379 = vadd.f32 0.0, %v378
    %v380 = vpop.f32.mrb[0].mxu0
    %v381 = vadd.f32 0.0, %v380
    %382 = vdwg.mxu0
    %v383 = vadd.f32 %v379, %v238
    %v384 = vxor.u32 %v383, 2147483648
    %v385 = vmul.f32 %v384, 1.442695
    %v386 = vpow.pop %v385
    %v387 = vadd.f32 %v386, 1.0
    %v388 = vrcp.pop %v387
    %v389 = vmul.f32 1.0, %v388
    %v390 = vmul.f32 %v389, 2.0
    %v391 = vsub.f32 %v390, 1.0
    %v392 = vmul.f32 %v389, %v259
    %394 = vrot.lane.b32.xlu0 %v391, 64
    %v395 = vpop.permute.xlu0 %394
    %v397 = vmul.f32 %v389, %v395
    %399 = vrot.lane.b32.xlu0 %v397, 32
    %v400 = vpop.permute.xlu0 %399
    %v402 = vadd.f32 %v392, %v400
    %v403 = vtanh.pop %v402
    %405 = vrot.lane.b32.xlu0 %v403, 64
    %v406 = vpop.permute.xlu0 %405
    %v408 = vmul.f32 %v389, %v406
    %v410 = vrot.slane %v381, 4
    %v412 = vadd.f32 %v119, %v410
    %v413 = vxor.u32 %v412, 2147483648
    %v414 = vmul.f32 %v413, 1.442695
    %v415 = vpow.pop %v414
    %v416 = vadd.f32 %v415, 1.0
    %v417 = vrcp.pop %v416
    %v418 = vmul.f32 1.0, %v417
    %v419 = vmul.f32 %v418, 2.0
    %v420 = vsub.f32 %v419, 1.0
    %v422 = vrot.slane %v291, 6
    %v424 = vmul.f32 %v418, %v422
    %426 = vrot.lane.b32.xlu0 %v420, 112
    %v427 = vpop.permute.xlu0 %426
    %v429 = vmul.f32 %v418, %v427
    %431 = vrot.lane.b32.xlu0 %v429, 8
    %v432 = vpop.permute.xlu0 %431
    %v434 = vadd.f32 %v424, %v432
    %v435 = vtanh.pop %v434
    %437 = vrot.lane.b32.xlu0 %v435, 16
    %v438 = vpop.permute.xlu0 %437
    %v440 = vmul.f32 %v418, %v438
    %442 = vrot.lane.b32.xlu0 %v440, 104
    %v443 = vpop.permute.xlu0 %442
    %v446 = vrot.slane %v408, 4
    %447 = vrot.lane.b32.xlu0 %v446, 40
    %v448 = vpop.permute.xlu0 %447
    %v450 = vsel %vm157, %v443, %v448
    %v452 = vrot.slane %v450, 4
    %v453 = vsel %vm159, %v452, 0
    %455 = vmatprep.subr.mxu0 %v22
    %456 = vmatpush1.msra.mxu0 %v21
    %457 = vmatprep.subr.mxu0 %v24
    %458 = vmatpush1.msra.mxu0 %v23
    %459 = vmatprep.subr.mxu0 %v26
    %460 = vmatpush1.msra.mxu0 %v25
    %461 = vmatprep.subr.mxu0 %v28
    %462 = vmatpush1.msra.mxu0 %v27
    %463 = vmatprep.subr.mxu0 %v30
    %464 = vmatpush1.msra.mxu0 %v29
    %465 = vmatprep.subr.mxu0 0.0
    %466 = vmatpush1.msra.mxu0 0.0
    %467 = vmatprep.subr.mxu0 0.0
    %468 = vmatpush1.msra.mxu0 0.0
    %469 = vmatprep.subr.mxu0 0.0
    %470 = vmatpush1.msra.mxu0 0.0
    %471 = vmatprep.subr.mxu0 0.0
    %472 = vmatpush1.msra.mxu0 0.0
    %473 = vmatprep.subr.mxu0 0.0
    %474 = vmatpush1.msra.mxu0 0.0
    %475 = vmatprep.subr.mxu0 0.0
    %476 = vmatpush1.msra.mxu0 0.0
    %477 = vmatprep.subr.mxu0 0.0
    %478 = vmatpush1.msra.mxu0 0.0
    %479 = vmatprep.subr.mxu0 0.0
    %480 = vmatpush1.msra.mxu0 0.0
    %481 = vmatprep.subr.mxu0 0.0
    %482 = vmatpush1.msra.mxu0 0.0
    %483 = vmatprep.subr.mxu0 0.0
    %484 = vmatpush1.msra.mxu0 0.0
    %485 = vmatprep.subr.mxu0 0.0
    %486 = vmatpush1.msra.mxu0 0.0
    %487 = vmatprep.subr.mxu0 0.0
    %488 = vmatpush1.msra.mxu0 0.0
    %489 = vmatprep.subr.mxu0 0.0
    %490 = vmatpush1.msra.mxu0 0.0
    %491 = vmatprep.subr.mxu0 0.0
    %492 = vmatpush1.msra.mxu0 0.0
    %493 = vmatprep.subr.mxu0 0.0
    %494 = vmatpush1.msra.mxu0 0.0
    %495 = vmatprep.subr.mxu0 0.0
    %496 = vmatpush1.msra.mxu0 0.0
    %497 = vmatprep.subr.mxu0 0.0
    %498 = vmatpush1.msra.mxu0 0.0
    %499 = vmatprep.subr.mxu0 0.0
    %500 = vmatpush1.msra.mxu0 0.0
    %501 = vmatprep.subr.mxu0 0.0
    %502 = vmatpush1.msra.mxu0 0.0
    %503 = vmatprep.subr.mxu0 0.0
    %504 = vmatpush1.msra.mxu0 0.0
    %505 = vmatprep.subr.mxu0 0.0
    %506 = vmatpush1.msra.mxu0 0.0
    %507 = vmatprep.subr.mxu0 0.0
    %508 = vmatpush1.msra.mxu0 0.0
    %509 = vmatprep.subr.mxu0 0.0
    %510 = vmatpush1.msra.mxu0 0.0
    %511 = vmatprep.subr.mxu0 0.0
    %512 = vmatpush1.msra.mxu0 0.0
    %513 = vmatprep.subr.mxu0 0.0
    %514 = vmatpush1.msra.mxu0 0.0
    %515 = vmatprep.subr.mxu0 0.0
    %516 = vmatpush1.msra.mxu0 0.0
    %517 = vmatprep.subr.mxu0 0.0
    %518 = vmatpush1.msra.mxu0 0.0
    %519 = vmatprep.mubr.f32.mxu0 0.0
    %520 = vmatmul.mubr.f32.gmra.mrb[0].mxu0 %v453
    %v521 = vpop.f32.mrb[0].mxu0
    %v522 = vadd.f32 0.0, %v521
    %v523 = vpop.f32.mrb[0].mxu0
    %v524 = vadd.f32 0.0, %v523
    %525 = vdwg.mxu0
    %v526 = vadd.f32 %v522, %v238
    %v527 = vxor.u32 %v526, 2147483648
    %v528 = vmul.f32 %v527, 1.442695
    %v529 = vpow.pop %v528
    %v530 = vadd.f32 %v529, 1.0
    %v531 = vrcp.pop %v530
    %v532 = vmul.f32 1.0, %v531
    %v533 = vmul.f32 %v532, 2.0
    %v534 = vsub.f32 %v533, 1.0
    %v535 = vmul.f32 %v532, %v402
    %537 = vrot.lane.b32.xlu0 %v534, 64
    %v538 = vpop.permute.xlu0 %537
    %v540 = vmul.f32 %v532, %v538
    %542 = vrot.lane.b32.xlu0 %v540, 32
    %v543 = vpop.permute.xlu0 %542
    %v545 = vadd.f32 %v535, %v543
    %v546 = vtanh.pop %v545
    %548 = vrot.lane.b32.xlu0 %v546, 64
    %v549 = vpop.permute.xlu0 %548
    %v551 = vmul.f32 %v532, %v549
    %v553 = vrot.slane %v524, 2
    %v555 = vadd.f32 %v119, %v553
    %v556 = vxor.u32 %v555, 2147483648
    %v557 = vmul.f32 %v556, 1.442695
    %v558 = vpow.pop %v557
    %v559 = vadd.f32 %v558, 1.0
    %v560 = vrcp.pop %v559
    %v561 = vmul.f32 1.0, %v560
    %v562 = vmul.f32 %v561, 2.0
    %v563 = vsub.f32 %v562, 1.0
    %v565 = vrot.slane %v434, 6
    %v567 = vmul.f32 %v561, %v565
    %569 = vrot.lane.b32.xlu0 %v563, 112
    %v570 = vpop.permute.xlu0 %569
    %v572 = vmul.f32 %v561, %v570
    %574 = vrot.lane.b32.xlu0 %v572, 8
    %v575 = vpop.permute.xlu0 %574
    %v577 = vadd.f32 %v567, %v575
    %v578 = vtanh.pop %v577
    %580 = vrot.lane.b32.xlu0 %v578, 16
    %v581 = vpop.permute.xlu0 %580
    %v583 = vmul.f32 %v561, %v581
    %585 = vrot.lane.b32.xlu0 %v583, 104
    %v586 = vpop.permute.xlu0 %585
    %v589 = vrot.slane %v551, 2
    %590 = vrot.lane.b32.xlu0 %v589, 40
    %v591 = vpop.permute.xlu0 %590
    %v593 = vsel %vm157, %v586, %v591
    %v595 = vrot.slane %v593, 6
    %v596 = vsel %vm159, %v595, 0
    %598 = vmatprep.subr.mxu0 %v22
    %599 = vmatpush1.msra.mxu0 %v21
    %600 = vmatprep.subr.mxu0 %v24
    %601 = vmatpush1.msra.mxu0 %v23
    %602 = vmatprep.subr.mxu0 %v26
    %603 = vmatpush1.msra.mxu0 %v25
    %604 = vmatprep.subr.mxu0 %v28
    %605 = vmatpush1.msra.mxu0 %v27
    %606 = vmatprep.subr.mxu0 %v30
    %607 = vmatpush1.msra.mxu0 %v29
    %608 = vmatprep.subr.mxu0 0.0
    %609 = vmatpush1.msra.mxu0 0.0
    %610 = vmatprep.subr.mxu0 0.0
    %611 = vmatpush1.msra.mxu0 0.0
    %612 = vmatprep.subr.mxu0 0.0
    %613 = vmatpush1.msra.mxu0 0.0
    %614 = vmatprep.subr.mxu0 0.0
    %615 = vmatpush1.msra.mxu0 0.0
    %616 = vmatprep.subr.mxu0 0.0
    %617 = vmatpush1.msra.mxu0 0.0
    %618 = vmatprep.subr.mxu0 0.0
    %619 = vmatpush1.msra.mxu0 0.0
    %620 = vmatprep.subr.mxu0 0.0
    %621 = vmatpush1.msra.mxu0 0.0
    %622 = vmatprep.subr.mxu0 0.0
    %623 = vmatpush1.msra.mxu0 0.0
    %624 = vmatprep.subr.mxu0 0.0
    %625 = vmatpush1.msra.mxu0 0.0
    %626 = vmatprep.subr.mxu0 0.0
    %627 = vmatpush1.msra.mxu0 0.0
    %628 = vmatprep.subr.mxu0 0.0
    %629 = vmatpush1.msra.mxu0 0.0
    %630 = vmatprep.subr.mxu0 0.0
    %631 = vmatpush1.msra.mxu0 0.0
    %632 = vmatprep.subr.mxu0 0.0
    %633 = vmatpush1.msra.mxu0 0.0
    %634 = vmatprep.subr.mxu0 0.0
    %635 = vmatpush1.msra.mxu0 0.0
    %636 = vmatprep.subr.mxu0 0.0
    %637 = vmatpush1.msra.mxu0 0.0
    %638 = vmatprep.subr.mxu0 0.0
    %639 = vmatpush1.msra.mxu0 0.0
    %640 = vmatprep.subr.mxu0 0.0
    %641 = vmatpush1.msra.mxu0 0.0
    %642 = vmatprep.subr.mxu0 0.0
    %643 = vmatpush1.msra.mxu0 0.0
    %644 = vmatprep.subr.mxu0 0.0
    %645 = vmatpush1.msra.mxu0 0.0
    %646 = vmatprep.subr.mxu0 0.0
    %647 = vmatpush1.msra.mxu0 0.0
    %648 = vmatprep.subr.mxu0 0.0
    %649 = vmatpush1.msra.mxu0 0.0
    %650 = vmatprep.subr.mxu0 0.0
    %651 = vmatpush1.msra.mxu0 0.0
    %652 = vmatprep.subr.mxu0 0.0
    %653 = vmatpush1.msra.mxu0 0.0
    %654 = vmatprep.subr.mxu0 0.0
    %655 = vmatpush1.msra.mxu0 0.0
    %656 = vmatprep.subr.mxu0 0.0
    %657 = vmatpush1.msra.mxu0 0.0
    %658 = vmatprep.subr.mxu0 0.0
    %659 = vmatpush1.msra.mxu0 0.0
    %660 = vmatprep.subr.mxu0 0.0
    %661 = vmatpush1.msra.mxu0 0.0
    %662 = vmatprep.mubr.f32.mxu0 0.0
    %663 = vmatmul.mubr.f32.gmra.mrb[0].mxu0 %v596
    %v664 = vpop.f32.mrb[0].mxu0
    %v665 = vadd.f32 0.0, %v664
    %v666 = vpop.f32.mrb[0].mxu0
    %v667 = vadd.f32 0.0, %v666
    %668 = vdwg.mxu0
    %v669 = vadd.f32 %v665, %v238
    %v670 = vxor.u32 %v669, 2147483648
    %v671 = vmul.f32 %v670, 1.442695
    %v672 = vpow.pop %v671
    %v673 = vadd.f32 %v672, 1.0
    %v674 = vrcp.pop %v673
    %v675 = vmul.f32 1.0, %v674
    %v676 = vmul.f32 %v675, 2.0
    %v677 = vsub.f32 %v676, 1.0
    %v678 = vmul.f32 %v675, %v545
    %680 = vrot.lane.b32.xlu0 %v677, 64
    %v681 = vpop.permute.xlu0 %680
    %v683 = vmul.f32 %v675, %v681
    %685 = vrot.lane.b32.xlu0 %v683, 32
    %v686 = vpop.permute.xlu0 %685
    %v688 = vadd.f32 %v678, %v686
    %v689 = vtanh.pop %v688
    %691 = vrot.lane.b32.xlu0 %v689, 64
    %v692 = vpop.permute.xlu0 %691
    %v694 = vmul.f32 %v675, %v692
    %v695 = vadd.f32 %v124, %v667
    %v696 = vxor.u32 %v695, 2147483648
    %v697 = vmul.f32 %v696, 1.442695
    %v698 = vpow.pop %v697
    %v699 = vadd.f32 %v698, 1.0
    %v700 = vrcp.pop %v699
    %v701 = vmul.f32 1.0, %v700
    %v702 = vmul.f32 %v701, 2.0
    %v703 = vsub.f32 %v702, 1.0
    %v705 = vrot.slane %v577, 6
    %v707 = vmul.f32 %v701, %v705
    %709 = vrot.lane.b32.xlu0 %v703, 112
    %v710 = vpop.permute.xlu0 %709
    %v712 = vmul.f32 %v701, %v710
    %714 = vrot.lane.b32.xlu0 %v712, 8
    %v715 = vpop.permute.xlu0 %714
    %v717 = vadd.f32 %v707, %v715
    %v718 = vtanh.pop %v717
    %720 = vrot.lane.b32.xlu0 %v718, 16
    %v721 = vpop.permute.xlu0 %720
    %v723 = vmul.f32 %v701, %v721
    %725 = vrot.lane.b32.xlu0 %v723, 104
    %v726 = vpop.permute.xlu0 %725
    %729 = vrot.lane.b32.xlu0 %v694, 40
    %v730 = vpop.permute.xlu0 %729
    %v732 = vsel %vm157, %v726, %v730
    %v734 = vsel %vm159, %v732, 0
    %736 = vmatprep.subr.mxu0 %v22
    %737 = vmatpush1.msra.mxu0 %v21
    %738 = vmatprep.subr.mxu0 %v24
    %739 = vmatpush1.msra.mxu0 %v23
    %740 = vmatprep.subr.mxu0 %v26
    %741 = vmatpush1.msra.mxu0 %v25
    %742 = vmatprep.subr.mxu0 %v28
    %743 = vmatpush1.msra.mxu0 %v27
    %744 = vmatprep.subr.mxu0 %v30
    %745 = vmatpush1.msra.mxu0 %v29
    %746 = vmatprep.subr.mxu0 0.0
    %747 = vmatpush1.msra.mxu0 0.0
    %748 = vmatprep.subr.mxu0 0.0
    %749 = vmatpush1.msra.mxu0 0.0
    %750 = vmatprep.subr.mxu0 0.0
    %751 = vmatpush1.msra.mxu0 0.0
    %752 = vmatprep.subr.mxu0 0.0
    %753 = vmatpush1.msra.mxu0 0.0
    %754 = vmatprep.subr.mxu0 0.0
    %755 = vmatpush1.msra.mxu0 0.0
    %756 = vmatprep.subr.mxu0 0.0
    %757 = vmatpush1.msra.mxu0 0.0
    %758 = vmatprep.subr.mxu0 0.0
    %759 = vmatpush1.msra.mxu0 0.0
    %760 = vmatprep.subr.mxu0 0.0
    %761 = vmatpush1.msra.mxu0 0.0
    %762 = vmatprep.subr.mxu0 0.0
    %763 = vmatpush1.msra.mxu0 0.0
    %764 = vmatprep.subr.mxu0 0.0
    %765 = vmatpush1.msra.mxu0 0.0
    %766 = vmatprep.subr.mxu0 0.0
    %767 = vmatpush1.msra.mxu0 0.0
    %768 = vmatprep.subr.mxu0 0.0
    %769 = vmatpush1.msra.mxu0 0.0
    %770 = vmatprep.subr.mxu0 0.0
    %771 = vmatpush1.msra.mxu0 0.0
    %772 = vmatprep.subr.mxu0 0.0
    %773 = vmatpush1.msra.mxu0 0.0
    %774 = vmatprep.subr.mxu0 0.0
    %775 = vmatpush1.msra.mxu0 0.0
    %776 = vmatprep.subr.mxu0 0.0
    %777 = vmatpush1.msra.mxu0 0.0
    %778 = vmatprep.subr.mxu0 0.0
    %779 = vmatpush1.msra.mxu0 0.0
    %780 = vmatprep.subr.mxu0 0.0
    %781 = vmatpush1.msra.mxu0 0.0
    %782 = vmatprep.subr.mxu0 0.0
    %783 = vmatpush1.msra.mxu0 0.0
    %784 = vmatprep.subr.mxu0 0.0
    %785 = vmatpush1.msra.mxu0 0.0
    %786 = vmatprep.subr.mxu0 0.0
    %787 = vmatpush1.msra.mxu0 0.0
    %788 = vmatprep.subr.mxu0 0.0
    %789 = vmatpush1.msra.mxu0 0.0
    %790 = vmatprep.subr.mxu0 0.0
    %791 = vmatpush1.msra.mxu0 0.0
    %792 = vmatprep.subr.mxu0 0.0
    %793 = vmatpush1.msra.mxu0 0.0
    %794 = vmatprep.subr.mxu0 0.0
    %795 = vmatpush1.msra.mxu0 0.0
    %796 = vmatprep.subr.mxu0 0.0
    %797 = vmatpush1.msra.mxu0 0.0
    %798 = vmatprep.subr.mxu0 0.0
    %799 = vmatpush1.msra.mxu0 0.0
    %800 = vmatprep.mubr.f32.mxu0 0.0
    %801 = vmatmul.mubr.f32.gmra.mrb[0].mxu0 %v734
    %v802 = vpop.f32.mrb[0].mxu0
    %v803 = vadd.f32 0.0, %v802
    %v804 = vpop.f32.mrb[0].mxu0
    %v805 = vadd.f32 0.0, %v804
    %806 = vdwg.mxu0
    %v807 = vadd.f32 %v803, %v238
    %v808 = vxor.u32 %v807, 2147483648
    %v809 = vmul.f32 %v808, 1.442695
    %v810 = vpow.pop %v809
    %v811 = vadd.f32 %v810, 1.0
    %v812 = vrcp.pop %v811
    %v813 = vmul.f32 1.0, %v812
    %v814 = vmul.f32 %v813, 2.0
    %v815 = vsub.f32 %v814, 1.0
    %v816 = vmul.f32 %v813, %v688
    %818 = vrot.lane.b32.xlu0 %v815, 64
    %v819 = vpop.permute.xlu0 %818
    %v821 = vmul.f32 %v813, %v819
    %823 = vrot.lane.b32.xlu0 %v821, 32
    %v824 = vpop.permute.xlu0 %823
    %v826 = vadd.f32 %v816, %v824
    %v827 = vtanh.pop %v826
    %829 = vrot.lane.b32.xlu0 %v827, 64
    %v830 = vpop.permute.xlu0 %829
    %v832 = vmul.f32 %v813, %v830
    %v834 = vrot.slane %v805, 6
    %v836 = vadd.f32 %v124, %v834
    %v837 = vxor.u32 %v836, 2147483648
    %v838 = vmul.f32 %v837, 1.442695
    %v839 = vpow.pop %v838
    %v840 = vadd.f32 %v839, 1.0
    %v841 = vrcp.pop %v840
    %v842 = vmul.f32 1.0, %v841
    %v843 = vmul.f32 %v842, 2.0
    %v844 = vsub.f32 %v843, 1.0
    %v846 = vrot.slane %v717, 6
    %v848 = vmul.f32 %v842, %v846
    %850 = vrot.lane.b32.xlu0 %v844, 112
    %v851 = vpop.permute.xlu0 %850
    %v853 = vmul.f32 %v842, %v851
    %855 = vrot.lane.b32.xlu0 %v853, 8
    %v856 = vpop.permute.xlu0 %855
    %v858 = vadd.f32 %v848, %v856
    %v859 = vtanh.pop %v858
    %861 = vrot.lane.b32.xlu0 %v859, 16
    %v862 = vpop.permute.xlu0 %861
    %v864 = vmul.f32 %v842, %v862
    %866 = vrot.lane.b32.xlu0 %v864, 104
    %v867 = vpop.permute.xlu0 %866
    %v870 = vrot.slane %v832, 6
    %871 = vrot.lane.b32.xlu0 %v870, 40
    %v872 = vpop.permute.xlu0 %871
    %v874 = vsel %vm157, %v867, %v872
    %v876 = vrot.slane %v874, 2
    %v877 = vsel %vm159, %v876, 0
    %879 = vmatprep.subr.mxu0 %v22
    %880 = vmatpush1.msra.mxu0 %v21
    %881 = vmatprep.subr.mxu0 %v24
    %882 = vmatpush1.msra.mxu0 %v23
    %883 = vmatprep.subr.mxu0 %v26
    %884 = vmatpush1.msra.mxu0 %v25
    %885 = vmatprep.subr.mxu0 %v28
    %886 = vmatpush1.msra.mxu0 %v27
    %887 = vmatprep.subr.mxu0 %v30
    %888 = vmatpush1.msra.mxu0 %v29
    %889 = vmatprep.subr.mxu0 0.0
    %890 = vmatpush1.msra.mxu0 0.0
    %891 = vmatprep.subr.mxu0 0.0
    %892 = vmatpush1.msra.mxu0 0.0
    %893 = vmatprep.subr.mxu0 0.0
    %894 = vmatpush1.msra.mxu0 0.0
    %895 = vmatprep.subr.mxu0 0.0
    %896 = vmatpush1.msra.mxu0 0.0
    %897 = vmatprep.subr.mxu0 0.0
    %898 = vmatpush1.msra.mxu0 0.0
    %899 = vmatprep.subr.mxu0 0.0
    %900 = vmatpush1.msra.mxu0 0.0
    %901 = vmatprep.subr.mxu0 0.0
    %902 = vmatpush1.msra.mxu0 0.0
    %903 = vmatprep.subr.mxu0 0.0
    %904 = vmatpush1.msra.mxu0 0.0
    %905 = vmatprep.subr.mxu0 0.0
    %906 = vmatpush1.msra.mxu0 0.0
    %907 = vmatprep.subr.mxu0 0.0
    %908 = vmatpush1.msra.mxu0 0.0
    %909 = vmatprep.subr.mxu0 0.0
    %910 = vmatpush1.msra.mxu0 0.0
    %911 = vmatprep.subr.mxu0 0.0
    %912 = vmatpush1.msra.mxu0 0.0
    %913 = vmatprep.subr.mxu0 0.0
    %914 = vmatpush1.msra.mxu0 0.0
    %915 = vmatprep.subr.mxu0 0.0
    %916 = vmatpush1.msra.mxu0 0.0
    %917 = vmatprep.subr.mxu0 0.0
    %918 = vmatpush1.msra.mxu0 0.0
    %919 = vmatprep.subr.mxu0 0.0
    %920 = vmatpush1.msra.mxu0 0.0
    %921 = vmatprep.subr.mxu0 0.0
    %922 = vmatpush1.msra.mxu0 0.0
    %923 = vmatprep.subr.mxu0 0.0
    %924 = vmatpush1.msra.mxu0 0.0
    %925 = vmatprep.subr.mxu0 0.0
    %926 = vmatpush1.msra.mxu0 0.0
    %927 = vmatprep.subr.mxu0 0.0
    %928 = vmatpush1.msra.mxu0 0.0
    %929 = vmatprep.subr.mxu0 0.0
    %930 = vmatpush1.msra.mxu0 0.0
    %931 = vmatprep.subr.mxu0 0.0
    %932 = vmatpush1.msra.mxu0 0.0
    %933 = vmatprep.subr.mxu0 0.0
    %934 = vmatpush1.msra.mxu0 0.0
    %935 = vmatprep.subr.mxu0 0.0
    %936 = vmatpush1.msra.mxu0 0.0
    %937 = vmatprep.subr.mxu0 0.0
    %938 = vmatpush1.msra.mxu0 0.0
    %939 = vmatprep.subr.mxu0 0.0
    %940 = vmatpush1.msra.mxu0 0.0
    %941 = vmatprep.subr.mxu0 0.0
    %942 = vmatpush1.msra.mxu0 0.0
    %943 = vmatprep.mubr.f32.mxu0 0.0
    %944 = vmatmul.mubr.f32.gmra.mrb[0].mxu0 %v877
    %v945 = vpop.f32.mrb[0].mxu0
    %v946 = vadd.f32 0.0, %v945
    %v947 = vpop.f32.mrb[0].mxu0
    %v948 = vadd.f32 0.0, %v947
    %949 = vdwg.mxu0
    %v950 = vadd.f32 %v946, %v238
    %v951 = vxor.u32 %v950, 2147483648
    %v952 = vmul.f32 %v951, 1.442695
    %v953 = vpow.pop %v952
    %v954 = vadd.f32 %v953, 1.0
    %v955 = vrcp.pop %v954
    %v956 = vmul.f32 1.0, %v955
    %v957 = vmul.f32 %v956, 2.0
    %v958 = vsub.f32 %v957, 1.0
    %v959 = vmul.f32 %v956, %v826
    %961 = vrot.lane.b32.xlu0 %v958, 64
    %v962 = vpop.permute.xlu0 %961
    %v964 = vmul.f32 %v956, %v962
    %966 = vrot.lane.b32.xlu0 %v964, 32
    %v967 = vpop.permute.xlu0 %966
    %v969 = vadd.f32 %v959, %v967
    %v970 = vtanh.pop %v969
    %972 = vrot.lane.b32.xlu0 %v970, 64
    %v973 = vpop.permute.xlu0 %972
    %v975 = vmul.f32 %v956, %v973
    %v977 = vrot.slane %v948, 4
    %v979 = vadd.f32 %v124, %v977
    %v980 = vxor.u32 %v979, 2147483648
    %v981 = vmul.f32 %v980, 1.442695
    %v982 = vpow.pop %v981
    %v983 = vadd.f32 %v982, 1.0
    %v984 = vrcp.pop %v983
    %v985 = vmul.f32 1.0, %v984
    %v986 = vmul.f32 %v985, 2.0
    %v987 = vsub.f32 %v986, 1.0
    %v989 = vrot.slane %v858, 6
    %v991 = vmul.f32 %v985, %v989
    %993 = vrot.lane.b32.xlu0 %v987, 112
    %v994 = vpop.permute.xlu0 %993
    %v996 = vmul.f32 %v985, %v994
    %998 = vrot.lane.b32.xlu0 %v996, 8
    %v999 = vpop.permute.xlu0 %998
    %v1001 = vadd.f32 %v991, %v999
    %v1002 = vtanh.pop %v1001
    %1004 = vrot.lane.b32.xlu0 %v1002, 16
    %v1005 = vpop.permute.xlu0 %1004
    %v1007 = vmul.f32 %v985, %v1005
    %1009 = vrot.lane.b32.xlu0 %v1007, 104
    %v1010 = vpop.permute.xlu0 %1009
    %v1013 = vrot.slane %v975, 4
    %1014 = vrot.lane.b32.xlu0 %v1013, 40
    %v1015 = vpop.permute.xlu0 %1014
    %v1017 = vsel %vm157, %v1010, %v1015
    %v1019 = vrot.slane %v1017, 4
    %v1020 = vsel %vm159, %v1019, 0
    %1022 = vmatprep.subr.mxu0 %v22
    %1023 = vmatpush1.msra.mxu0 %v21
    %1024 = vmatprep.subr.mxu0 %v24
    %1025 = vmatpush1.msra.mxu0 %v23
    %1026 = vmatprep.subr.mxu0 %v26
    %1027 = vmatpush1.msra.mxu0 %v25
    %1028 = vmatprep.subr.mxu0 %v28
    %1029 = vmatpush1.msra.mxu0 %v27
    %1030 = vmatprep.subr.mxu0 %v30
    %1031 = vmatpush1.msra.mxu0 %v29
    %1032 = vmatprep.subr.mxu0 0.0
    %1033 = vmatpush1.msra.mxu0 0.0
    %1034 = vmatprep.subr.mxu0 0.0
    %1035 = vmatpush1.msra.mxu0 0.0
    %1036 = vmatprep.subr.mxu0 0.0
    %1037 = vmatpush1.msra.mxu0 0.0
    %1038 = vmatprep.subr.mxu0 0.0
    %1039 = vmatpush1.msra.mxu0 0.0
    %1040 = vmatprep.subr.mxu0 0.0
    %1041 = vmatpush1.msra.mxu0 0.0
    %1042 = vmatprep.subr.mxu0 0.0
    %1043 = vmatpush1.msra.mxu0 0.0
    %1044 = vmatprep.subr.mxu0 0.0
    %1045 = vmatpush1.msra.mxu0 0.0
    %1046 = vmatprep.subr.mxu0 0.0
    %1047 = vmatpush1.msra.mxu0 0.0
    %1048 = vmatprep.subr.mxu0 0.0
    %1049 = vmatpush1.msra.mxu0 0.0
    %1050 = vmatprep.subr.mxu0 0.0
    %1051 = vmatpush1.msra.mxu0 0.0
    %1052 = vmatprep.subr.mxu0 0.0
    %1053 = vmatpush1.msra.mxu0 0.0
    %1054 = vmatprep.subr.mxu0 0.0
    %1055 = vmatpush1.msra.mxu0 0.0
    %1056 = vmatprep.subr.mxu0 0.0
    %1057 = vmatpush1.msra.mxu0 0.0
    %1058 = vmatprep.subr.mxu0 0.0
    %1059 = vmatpush1.msra.mxu0 0.0
    %1060 = vmatprep.subr.mxu0 0.0
    %1061 = vmatpush1.msra.mxu0 0.0
    %1062 = vmatprep.subr.mxu0 0.0
    %1063 = vmatpush1.msra.mxu0 0.0
    %1064 = vmatprep.subr.mxu0 0.0
    %1065 = vmatpush1.msra.mxu0 0.0
    %1066 = vmatprep.subr.mxu0 0.0
    %1067 = vmatpush1.msra.mxu0 0.0
    %1068 = vmatprep.subr.mxu0 0.0
    %1069 = vmatpush1.msra.mxu0 0.0
    %1070 = vmatprep.subr.mxu0 0.0
    %1071 = vmatpush1.msra.mxu0 0.0
    %1072 = vmatprep.subr.mxu0 0.0
    %1073 = vmatpush1.msra.mxu0 0.0
    %1074 = vmatprep.subr.mxu0 0.0
    %1075 = vmatpush1.msra.mxu0 0.0
    %1076 = vmatprep.subr.mxu0 0.0
    %1077 = vmatpush1.msra.mxu0 0.0
    %1078 = vmatprep.subr.mxu0 0.0
    %1079 = vmatpush1.msra.mxu0 0.0
    %1080 = vmatprep.subr.mxu0 0.0
    %1081 = vmatpush1.msra.mxu0 0.0
    %1082 = vmatprep.subr.mxu0 0.0
    %1083 = vmatpush1.msra.mxu0 0.0
    %1084 = vmatprep.subr.mxu0 0.0
    %1085 = vmatpush1.msra.mxu0 0.0
    %1086 = vmatprep.mubr.f32.mxu0 0.0
    %1087 = vmatmul.mubr.f32.gmra.mrb[0].mxu0 %v1020
    %v1088 = vpop.f32.mrb[0].mxu0
    %v1089 = vadd.f32 0.0, %v1088
    %v1090 = vpop.f32.mrb[0].mxu0
    %v1091 = vadd.f32 0.0, %v1090
    %1092 = vdwg.mxu0
    %v1093 = vadd.f32 %v1089, %v238
    %v1094 = vxor.u32 %v1093, 2147483648
    %v1095 = vmul.f32 %v1094, 1.442695
    %v1096 = vpow.pop %v1095
    %v1097 = vadd.f32 %v1096, 1.0
    %v1098 = vrcp.pop %v1097
    %v1099 = vmul.f32 1.0, %v1098
    %v1100 = vmul.f32 %v1099, 2.0
    %v1101 = vsub.f32 %v1100, 1.0
    %v1102 = vmul.f32 %v1099, %v969
    %1104 = vrot.lane.b32.xlu0 %v1101, 64
    %v1105 = vpop.permute.xlu0 %1104
    %v1107 = vmul.f32 %v1099, %v1105
    %1109 = vrot.lane.b32.xlu0 %v1107, 32
    %v1110 = vpop.permute.xlu0 %1109
    %v1112 = vadd.f32 %v1102, %v1110
    %v1113 = vtanh.pop %v1112
    %1115 = vrot.lane.b32.xlu0 %v1113, 64
    %v1116 = vpop.permute.xlu0 %1115
    %v1118 = vmul.f32 %v1099, %v1116
    %v1120 = vrot.slane %v1091, 2
    %v1122 = vadd.f32 %v124, %v1120
    %v1123 = vxor.u32 %v1122, 2147483648
    %v1124 = vmul.f32 %v1123, 1.442695
    %v1125 = vpow.pop %v1124
    %v1126 = vadd.f32 %v1125, 1.0
    %v1127 = vrcp.pop %v1126
    %v1128 = vmul.f32 1.0, %v1127
    %v1129 = vmul.f32 %v1128, 2.0
    %v1130 = vsub.f32 %v1129, 1.0
    %v1132 = vrot.slane %v1001, 6
    %v1134 = vmul.f32 %v1128, %v1132
    %1136 = vrot.lane.b32.xlu0 %v1130, 112
    %v1137 = vpop.permute.xlu0 %1136
    %v1139 = vmul.f32 %v1128, %v1137
    %1141 = vrot.lane.b32.xlu0 %v1139, 8
    %v1142 = vpop.permute.xlu0 %1141
    %v1144 = vadd.f32 %v1134, %v1142
    %v1145 = vtanh.pop %v1144
    %1147 = vrot.lane.b32.xlu0 %v1145, 16
    %v1148 = vpop.permute.xlu0 %1147
    %v1150 = vmul.f32 %v1128, %v1148
    %1152 = vrot.lane.b32.xlu0 %v1150, 104
    %v1153 = vpop.permute.xlu0 %1152
    %v1156 = vrot.slane %v1118, 2
    %1157 = vrot.lane.b32.xlu0 %v1156, 40
    %v1158 = vpop.permute.xlu0 %1157
    %v1160 = vsel %vm157, %v1153, %v1158
    %v1162 = vrot.slane %v1160, 6
    %v1163 = vsel %vm159, %v1162, 0
    %1165 = vmatprep.subr.mxu0 %v22
    %1166 = vmatpush1.msra.mxu0 %v21
    %1167 = vmatprep.subr.mxu0 %v24
    %1168 = vmatpush1.msra.mxu0 %v23
    %1169 = vmatprep.subr.mxu0 %v26
    %1170 = vmatpush1.msra.mxu0 %v25
    %1171 = vmatprep.subr.mxu0 %v28
    %1172 = vmatpush1.msra.mxu0 %v27
    %1173 = vmatprep.subr.mxu0 %v30
    %1174 = vmatpush1.msra.mxu0 %v29
    %1175 = vmatprep.subr.mxu0 0.0
    %1176 = vmatpush1.msra.mxu0 0.0
    %1177 = vmatprep.subr.mxu0 0.0
    %1178 = vmatpush1.msra.mxu0 0.0
    %1179 = vmatprep.subr.mxu0 0.0
    %1180 = vmatpush1.msra.mxu0 0.0
    %1181 = vmatprep.subr.mxu0 0.0
    %1182 = vmatpush1.msra.mxu0 0.0
    %1183 = vmatprep.subr.mxu0 0.0
    %1184 = vmatpush1.msra.mxu0 0.0
    %1185 = vmatprep.subr.mxu0 0.0
    %1186 = vmatpush1.msra.mxu0 0.0
    %1187 = vmatprep.subr.mxu0 0.0
    %1188 = vmatpush1.msra.mxu0 0.0
    %1189 = vmatprep.subr.mxu0 0.0
    %1190 = vmatpush1.msra.mxu0 0.0
    %1191 = vmatprep.subr.mxu0 0.0
    %1192 = vmatpush1.msra.mxu0 0.0
    %1193 = vmatprep.subr.mxu0 0.0
    %1194 = vmatpush1.msra.mxu0 0.0
    %1195 = vmatprep.subr.mxu0 0.0
    %1196 = vmatpush1.msra.mxu0 0.0
    %1197 = vmatprep.subr.mxu0 0.0
    %1198 = vmatpush1.msra.mxu0 0.0
    %1199 = vmatprep.subr.mxu0 0.0
    %1200 = vmatpush1.msra.mxu0 0.0
    %1201 = vmatprep.subr.mxu0 0.0
    %1202 = vmatpush1.msra.mxu0 0.0
    %1203 = vmatprep.subr.mxu0 0.0
    %1204 = vmatpush1.msra.mxu0 0.0
    %1205 = vmatprep.subr.mxu0 0.0
    %1206 = vmatpush1.msra.mxu0 0.0
    %1207 = vmatprep.subr.mxu0 0.0
    %1208 = vmatpush1.msra.mxu0 0.0
    %1209 = vmatprep.subr.mxu0 0.0
    %1210 = vmatpush1.msra.mxu0 0.0
    %1211 = vmatprep.subr.mxu0 0.0
    %1212 = vmatpush1.msra.mxu0 0.0
    %1213 = vmatprep.subr.mxu0 0.0
    %1214 = vmatpush1.msra.mxu0 0.0
    %1215 = vmatprep.subr.mxu0 0.0
    %1216 = vmatpush1.msra.mxu0 0.0
    %1217 = vmatprep.subr.mxu0 0.0
    %1218 = vmatpush1.msra.mxu0 0.0
    %1219 = vmatprep.subr.mxu0 0.0
    %1220 = vmatpush1.msra.mxu0 0.0
    %1221 = vmatprep.subr.mxu0 0.0
    %1222 = vmatpush1.msra.mxu0 0.0
    %1223 = vmatprep.subr.mxu0 0.0
    %1224 = vmatpush1.msra.mxu0 0.0
    %1225 = vmatprep.subr.mxu0 0.0
    %1226 = vmatpush1.msra.mxu0 0.0
    %1227 = vmatprep.subr.mxu0 0.0
    %1228 = vmatpush1.msra.mxu0 0.0
    %1229 = vmatprep.mubr.f32.mxu0 0.0
    %1230 = vmatmul.mubr.f32.gmra.mrb[0].mxu0 %v1163
    %v1231 = vpop.f32.mrb[0].mxu0
    %v1232 = vadd.f32 0.0, %v1231
    %v1233 = vpop.f32.mrb[0].mxu0
    %1234 = vdwg.mxu0
    %v1235 = vadd.f32 %v1232, %v238
    %v1236 = vxor.u32 %v1235, 2147483648
    %v1237 = vmul.f32 %v1236, 1.442695
    %v1238 = vpow.pop %v1237
    %v1239 = vadd.f32 %v1238, 1.0
    %v1240 = vrcp.pop %v1239
    %v1241 = vmul.f32 1.0, %v1240
    %v1242 = vmul.f32 %v1241, 2.0
    %v1243 = vsub.f32 %v1242, 1.0
    %v1244 = vmul.f32 %v1241, %v1112
    %1246 = vrot.lane.b32.xlu0 %v1243, 64
    %v1247 = vpop.permute.xlu0 %1246
    %v1249 = vmul.f32 %v1241, %v1247
    %1251 = vrot.lane.b32.xlu0 %v1249, 32
    %v1252 = vpop.permute.xlu0 %1251
    %v1254 = vadd.f32 %v1244, %v1252
    %v1255 = vtanh.pop %v1254
    %1257 = vrot.lane.b32.xlu0 %v1255, 64
    %v1258 = vpop.permute.xlu0 %1257
    %v1260 = vmul.f32 %v1241, %v1258
    %1262 = vrot.lane.b32.xlu0 %v1260, 32
    %v1263 = vpop.permute.xlu0 %1262
    %vm1265 = vcmask 254976
    %1266 = vst.msk [vmem:[#allocation2] sm:$0x3] %vm1265, %v1263
    // Predicated region
    $region22: #{encoder_forward.1} parent=1 // pred_check
      _
    $region23: #{encoder_forward.1} parent=1 // pred_check_branch
      %1268 = sbr.rel (0) target = $region25
    $region24: #{encoder_forward.1} parent=1 // pred_region
      %s1270 = ssub.s32 32, 32
      %1271 = vsyncadd [#allocation3], %s1270
      %s1273 = sshll.u32 [#allocation2], 4
      %s1274 = int_to_ptr.vmem [resolvable:$true] %s1273
      %1276 = dma.vmem_to_hbm [thread:$0]  %s1274, 32, %s5, [#allocation3]
    $region25: #{encoder_forward.1} parent=1 // pred_fallthru
      _
    // Predicated region
    $region26: #{encoder_forward.1} parent=1 // pred_check
      _
    $region27: #{encoder_forward.1} parent=1 // pred_check_branch
      %1278 = sbr.rel (0) target = $region29
    $region28: #{encoder_forward.1} parent=1 // pred_region
      %1279 = dma.done [#allocation3], 32
    $region29: #{encoder_forward.1} parent=1 // pred_fallthru
      _
    %1280 = vsyncpa [#allocation3], 1

</llo_original>
